<compile_context>
chip_gen: v5e
topology: v5e:2x2
jax: 0.10.0
libtpu: 0.0.40
codegen_flags: <defaults>
</compile_context>

<pallas_src>
import functools

import jax
import jax.numpy as jnp
from jax import lax
from jax.experimental import pallas as pl
from jax.experimental.pallas import tpu as pltpu


def _encoder_kernel(emb2d_ref, mask_ref,
                    w_in_ref, gib_ref,
                    whh_f_ref, whh_b_ref, bhhn_f_ref, bhhn_b_ref,
                    wfc_f_ref, wfc_b_ref, bfc_ref,
                    out_ref, hid_ref,
                    gi_scr,
                    *, T, B, H, GP):
    G = 3 * H

    # ---- hoisted input projection: ONE fused MXU matmul for both directions ----
    # Columns [0:G] are the forward gates, [GP:GP+G] the backward gates
    # (each block zero-padded to GP lanes so per-step slices are vreg-aligned).
    gi_scr[...] = (jnp.dot(emb2d_ref[...], w_in_ref[...],
                           preferred_element_type=jnp.float32)
                   + gib_ref[...])                                   # [T*B, 2*GP]

    whh_f = whh_f_ref[...]                                           # [H, 3H]
    whh_b = whh_b_ref[...]
    # Hoisted [1,H]->[B,H] broadcasts (JAX does not CSE broadcast_in_dim across
    # the unrolled iterations, so do it once here).
    bhhn_f = jnp.broadcast_to(bhhn_f_ref[...], (B, H))
    bhhn_b = jnp.broadcast_to(bhhn_b_ref[...], (B, H))
    h0 = jnp.zeros((B, H), jnp.float32)

    def gru_step(gi, h, whh_t, bhh_n):
        # gi already contains x @ W_ih^T + b_ih (+ b_hh for r/z gates).
        gh = jnp.dot(h, whh_t, preferred_element_type=jnp.float32)   # [B, 3H]
        r = jax.nn.sigmoid(gi[:, :H] + gh[:, :H])
        z = jax.nn.sigmoid(gi[:, H:2 * H] + gh[:, H:2 * H])
        n = jnp.tanh(gi[:, 2 * H:] + r * (gh[:, 2 * H:] + bhh_n))
        return (1.0 - z) * n + z * h

    def body(t, carry):
        h_f, h_b = carry
        tb = T - 1 - t

        row_f = pl.multiple_of(t * B, 8)
        row_b = pl.multiple_of(tb * B, 8)
        gi_f = gi_scr[pl.ds(row_f, B), pl.ds(0, G)]                  # [B, 3H]
        gi_b = gi_scr[pl.ds(row_b, B), pl.ds(GP, G)]

        # Two independent direction chains per iteration (ILP on the recurrence).
        h_f_new = gru_step(gi_f, h_f, whh_f, bhhn_f)
        h_b_new = gru_step(gi_b, h_b, whh_b, bhhn_b)

        # Precomputed {0,1} masks, already broadcast to [B, H] in the wrapper.
        m_f = mask_ref[t]
        m_b = mask_ref[tb]

        hm_f = h_f_new * m_f
        hm_b = h_b_new * m_b
        # Single [T, B, 2H] output: fwd half at lanes [0:H], bwd half at [H:2H].
        out_ref[t, :, pl.ds(0, H)] = hm_f
        out_ref[tb, :, pl.ds(H, H)] = hm_b
        # Exact select: m in {0,1} -> m*h_new + (1-m)*h is bitwise where(mask,...).
        return (hm_f + h_f * (1.0 - m_f),
                hm_b + h_b * (1.0 - m_b))

    # T is small and static here -> full unroll is fine; use partial unroll for large T.
    h_f, h_b = lax.fori_loop(0, T, body, (h0, h0), unroll=True)

    # hidden = tanh([h_f | h_b] @ W_fc^T + b_fc) without an in-kernel concat.
    hid_ref[...] = jnp.tanh(
        jnp.dot(h_f, wfc_f_ref[...], preferred_element_type=jnp.float32)
        + jnp.dot(h_b, wfc_b_ref[...], preferred_element_type=jnp.float32)
        + bfc_ref[...])


def encoder_forward(src_tokens, src_len, params):
    """src_tokens: [T, B] int32, src_len: [B] int32."""
    T, B = src_tokens.shape
    E = params["emb"].shape[1]
    H = params["w_hh_f"].shape[1]          # enc_hid_dim
    D = params["w_fc"].shape[0]            # dec_hid_dim
    G = 3 * H
    GP = ((G + 127) // 128) * 128          # per-direction gate block, lane-aligned

    # Pad batch to a sublane multiple (8); padded rows have len 0 -> always masked.
    B_pad = ((B + 7) // 8) * 8
    src_p = jnp.pad(src_tokens, ((0, 0), (0, B_pad - B)))
    lens_p = jnp.pad(src_len.astype(jnp.int32), (0, B_pad - B))               # [B_pad]

    # Glue: embedding lookup (gather) + dropout(identity, eval mode).
    embedded = jnp.take(params["emb"], src_p, axis=0).astype(jnp.float32)     # [T, B_pad, E]
    emb2d = embedded.reshape(T * B_pad, E)

    # Per-step validity masks, precomputed and pre-broadcast so the unrolled
    # recurrence contains no compares / broadcasts / selects.
    mask = (jnp.arange(T, dtype=jnp.int32)[:, None] < lens_p[None, :])
    mask = jnp.broadcast_to(mask.astype(jnp.float32)[:, :, None], (T, B_pad, H))

    # Per-direction weight prep: pre-transposed, biases pre-combined.
    def prep_dir(w_ih, w_hh, b_ih, b_hh):
        w_in = w_ih.T                                                 # [E, 3H]
        gib = jnp.concatenate([b_ih[:H] + b_hh[:H],                   # r gate
                               b_ih[H:2 * H] + b_hh[H:2 * H],         # z gate
                               b_ih[2 * H:]]).reshape(1, G)           # n gate (input part)
        whh_t = w_hh.T                                                # [H, 3H]
        bhh_n = b_hh[2 * H:].reshape(1, H)                            # n gate (hidden part)
        return w_in, gib, whh_t, bhh_n

    w_in_f, gib_f, whh_f_t, bhhn_f = prep_dir(params["w_ih_f"], params["w_hh_f"],
                                              params["b_ih_f"], params["b_hh_f"])
    w_in_b, gib_b, whh_b_t, bhhn_b = prep_dir(params["w_ih_b"], params["w_hh_b"],
                                              params["b_ih_b"], params["b_hh_b"])

    # Fused input-projection weights: [E, 2*GP]; each 3H block zero-padded to GP lanes.
    pad = GP - G
    w_in_packed = jnp.concatenate([jnp.pad(w_in_f, ((0, 0), (0, pad))),
                                   jnp.pad(w_in_b, ((0, 0), (0, pad)))], axis=1)
    gib_packed = jnp.concatenate([jnp.pad(gib_f, ((0, 0), (0, pad))),
                                  jnp.pad(gib_b, ((0, 0), (0, pad)))], axis=1)

    wfc_t = params["w_fc"].T                                          # [2H, D]
    wfc_f_t, wfc_b_t = wfc_t[:H], wfc_t[H:]                           # [H, D] each
    bfc = params["b_fc"].reshape(1, D)

    kernel = functools.partial(_encoder_kernel, T=T, B=B_pad, H=H, GP=GP)
    vmem = pl.BlockSpec(memory_space=pltpu.MemorySpace.VMEM)
    n_in = 11

    out, hid = pl.pallas_call(
        kernel,
        out_shape=(
            jax.ShapeDtypeStruct((T, B_pad, 2 * H), jnp.float32),
            jax.ShapeDtypeStruct((B_pad, D), jnp.float32),
        ),
        in_specs=[vmem] * n_in,
        out_specs=(vmem, vmem),
        scratch_shapes=[pltpu.VMEM((T * B_pad, 2 * GP), jnp.float32)],
    )(emb2d, mask, w_in_packed, gib_packed,
      whh_f_t, whh_b_t, bhhn_f, bhhn_b,
      wfc_f_t, wfc_b_t, bfc)

    outputs = out[:, :B, :]                                           # [T, B, 2H]
    hidden = hid[:B]                                                  # [B, D]
    return outputs, hidden


# ----------------------------- reference (pure JAX) -----------------------------
def _ref_gru_step(x, h, w_ih, w_hh, b_ih, b_hh, H):
    gi = x @ w_ih.T + b_ih
    gh = h @ w_hh.T + b_hh
    r = jax.nn.sigmoid(gi[:, :H] + gh[:, :H])
    z = jax.nn.sigmoid(gi[:, H:2 * H] + gh[:, H:2 * H])
    n = jnp.tanh(gi[:, 2 * H:] + r * gh[:, 2 * H:])
    return (1.0 - z) * n + z * h


def encoder_reference(src_tokens, src_len, params):
    T, B = src_tokens.shape
    H = params["w_hh_f"].shape[1]
    emb = jnp.take(params["emb"], src_tokens, axis=0).astype(jnp.float32)
    lens = src_len.astype(jnp.int32)

    out_f = []
    h = jnp.zeros((B, H), jnp.float32)
    for t in range(T):
        h_new = _ref_gru_step(emb[t], h, params["w_ih_f"], params["w_hh_f"],
                              params["b_ih_f"], params["b_hh_f"], H)
        mask = (t < lens)[:, None]
        out_f.append(jnp.where(mask, h_new, 0.0))
        h = jnp.where(mask, h_new, h)
    h_fwd = h

    out_b = [None] * T
    h = jnp.zeros((B, H), jnp.float32)
    for t in range(T - 1, -1, -1):
        h_new = _ref_gru_step(emb[t], h, params["w_ih_b"], params["w_hh_b"],
                              params["b_ih_b"], params["b_hh_b"], H)
        mask = (t < lens)[:, None]
        out_b[t] = jnp.where(mask, h_new, 0.0)
        h = jnp.where(mask, h_new, h)
    h_bwd = h

    outputs = jnp.concatenate(
        [jnp.stack(out_f, axis=0), jnp.stack(out_b, axis=0)], axis=-1)
    hidden = jnp.tanh(jnp.concatenate([h_fwd, h_bwd], -1) @ params["w_fc"].T
                      + params["b_fc"])
    return outputs, hidden


# ----------------------------- parameter init -----------------------------
def init_params(key, input_dim, emb_dim, enc_hid_dim, dec_hid_dim):
    ks = jax.random.split(key, 12)
    s = 0.1
    return {
        "emb":    s * jax.random.normal(ks[0], (input_dim, emb_dim), jnp.float32),
        "w_ih_f": s * jax.random.normal(ks[1], (3 * enc_hid_dim, emb_dim), jnp.float32),
        "w_hh_f": s * jax.random.normal(ks[2], (3 * enc_hid_dim, enc_hid_dim), jnp.float32),
        "b_ih_f": s * jax.random.normal(ks[3], (3 * enc_hid_dim,), jnp.float32),
        "b_hh_f": s * jax.random.normal(ks[4], (3 * enc_hid_dim,), jnp.float32),
        "w_ih_b": s * jax.random.normal(ks[5], (3 * enc_hid_dim, emb_dim), jnp.float32),
        "w_hh_b": s * jax.random.normal(ks[6], (3 * enc_hid_dim, enc_hid_dim), jnp.float32),
        "b_ih_b": s * jax.random.normal(ks[7], (3 * enc_hid_dim,), jnp.float32),
        "b_hh_b": s * jax.random.normal(ks[8], (3 * enc_hid_dim,), jnp.float32),
        "w_fc":   s * jax.random.normal(ks[9], (dec_hid_dim, 2 * enc_hid_dim), jnp.float32),
        "b_fc":   s * jax.random.normal(ks[10], (dec_hid_dim,), jnp.float32),
    }


if __name__ == "__main__":
    # Small shapes consistent with the module's forward.
    input_dim, emb_dim, enc_hid_dim, dec_hid_dim = 50, 32, 32, 32
    T, B = 8, 4

    key = jax.random.PRNGKey(0)
    kp, kt = jax.random.split(key)
    params = init_params(kp, input_dim, emb_dim, enc_hid_dim, dec_hid_dim)

    src = jax.random.randint(kt, (T, B), 0, input_dim, dtype=jnp.int32)   # [T, B]
    src_len = jnp.array([8, 7, 5, 3], dtype=jnp.int32)                    # sorted desc, max == T

    outputs, hidden = encoder_forward(src, src_len, params)
    jax.block_until_ready((outputs, hidden))

    ref_out, ref_hid = encoder_reference(src, src_len, params)
    assert outputs.shape == (T, B, 2 * enc_hid_dim)
    assert hidden.shape == (B, dec_hid_dim)
    assert jnp.allclose(outputs, ref_out, atol=1e-5, rtol=1e-5)
    assert jnp.allclose(hidden, ref_hid, atol=1e-5, rtol=1e-5)

    print("KERNEL_OK")
</pallas_src>

<mosaic_0001>
module attributes {stable_mosaic.version = 11 : i64} {
  func.func @_encoder_kernel(%arg0: memref<64x32xf32, #tpu.memory_space<vmem>>, %arg1: memref<8x8x32xf32, #tpu.memory_space<vmem>>, %arg2: memref<32x256xf32, #tpu.memory_space<vmem>>, %arg3: memref<1x256xf32, #tpu.memory_space<vmem>>, %arg4: memref<32x96xf32, #tpu.memory_space<vmem>>, %arg5: memref<32x96xf32, #tpu.memory_space<vmem>>, %arg6: memref<1x32xf32, #tpu.memory_space<vmem>>, %arg7: memref<1x32xf32, #tpu.memory_space<vmem>>, %arg8: memref<32x32xf32, #tpu.memory_space<vmem>>, %arg9: memref<32x32xf32, #tpu.memory_space<vmem>>, %arg10: memref<1x32xf32, #tpu.memory_space<vmem>>, %arg11: memref<8x8x64xf32, #tpu.memory_space<vmem>>, %arg12: memref<8x32xf32, #tpu.memory_space<vmem>>, %arg13: memref<64x256xf32, #tpu.memory_space<vmem>>) attributes {dimension_semantics = [], scalar_prefetch = 0 : i64, scratch_operands = 1 : i64, tpu.core_type = #tpu.core_type<tc>} {
    %c0 = arith.constant 0 : index
    %c0_0 = arith.constant 0 : index
    %0 = vector.load %arg0[%c0, %c0_0] : memref<64x32xf32, #tpu.memory_space<vmem>>, vector<64x32xf32>
    %c0_1 = arith.constant 0 : index
    %c0_2 = arith.constant 0 : index
    %1 = vector.load %arg2[%c0_1, %c0_2] : memref<32x256xf32, #tpu.memory_space<vmem>>, vector<32x256xf32>
    %cst = arith.constant dense<0.000000e+00> : vector<64x256xf32>
    %2 = tpu.matmul %0, %1, %cst {dimension_numbers = #tpu.dot_dimension_numbers<[1], [0], [0], [1], [0, 0, 1, 1], [], []>} : vector<64x32xf32>, vector<32x256xf32>, vector<64x256xf32> -> vector<64x256xf32>
    %c0_3 = arith.constant 0 : index
    %c0_4 = arith.constant 0 : index
    %3 = vector.load %arg3[%c0_3, %c0_4] : memref<1x256xf32, #tpu.memory_space<vmem>>, vector<1x256xf32>
    %4 = vector.broadcast %3 : vector<1x256xf32> to vector<64x256xf32>
    %5 = arith.addf %2, %4 : vector<64x256xf32>
    %c0_5 = arith.constant 0 : index
    %c0_6 = arith.constant 0 : index
    %6 = vector.load %arg13[%c0_5, %c0_6] : memref<64x256xf32, #tpu.memory_space<vmem>>, vector<64x256xf32>
    tpu.vector_store %arg13[%c0_5, %c0_6], %5 {strides = array<i32>} : memref<64x256xf32, #tpu.memory_space<vmem>>, vector<64x256xf32>,
    %c0_7 = arith.constant 0 : index
    %c0_8 = arith.constant 0 : index
    %7 = vector.load %arg4[%c0_7, %c0_8] : memref<32x96xf32, #tpu.memory_space<vmem>>, vector<32x96xf32>
    %c0_9 = arith.constant 0 : index
    %c0_10 = arith.constant 0 : index
    %8 = vector.load %arg5[%c0_9, %c0_10] : memref<32x96xf32, #tpu.memory_space<vmem>>, vector<32x96xf32>
    %c0_11 = arith.constant 0 : index
    %c0_12 = arith.constant 0 : index
    %9 = vector.load %arg6[%c0_11, %c0_12] : memref<1x32xf32, #tpu.memory_space<vmem>>, vector<1x32xf32>
    %10 = vector.shape_cast %9 : vector<1x32xf32> to vector<1x32xf32>
    %11 = vector.broadcast %10 : vector<1x32xf32> to vector<8x32xf32>
    %c0_13 = arith.constant 0 : index
    %c0_14 = arith.constant 0 : index
    %12 = vector.load %arg7[%c0_13, %c0_14] : memref<1x32xf32, #tpu.memory_space<vmem>>, vector<1x32xf32>
    %13 = vector.shape_cast %12 : vector<1x32xf32> to vector<1x32xf32>
    %14 = vector.broadcast %13 : vector<1x32xf32> to vector<8x32xf32>
    %cst_15 = arith.constant 0.000000e+00 : f32
    %15 = vector.broadcast %cst_15 : f32 to vector<8x32xf32>
    %c0_i32 = arith.constant 0 : i32
    %c7_i32 = arith.constant 7 : i32
    %16 = arith.subi %c7_i32, %c0_i32 : i32
    %c8_i32 = arith.constant 8 : i32
    %17 = arith.muli %c0_i32, %c8_i32 : i32
    %18 = tpu.assume_multiple %17, 8 : i32
    %c8_i32_16 = arith.constant 8 : i32
    %19 = arith.muli %16, %c8_i32_16 : i32
    %20 = tpu.assume_multiple %19, 8 : i32
    %21 = arith.index_cast %18 : i32 to index
    %c0_17 = arith.constant 0 : index
    %22 = vector.load %arg13[%21, %c0_17] : memref<64x256xf32, #tpu.memory_space<vmem>>, vector<8x96xf32>
    %23 = arith.index_cast %20 : i32 to index
    %c128 = arith.constant 128 : index
    %24 = vector.load %arg13[%23, %c128] : memref<64x256xf32, #tpu.memory_space<vmem>>, vector<8x96xf32>
    %cst_18 = arith.constant dense<0.000000e+00> : vector<8x96xf32>
    %25 = tpu.matmul %15, %7, %cst_18 {dimension_numbers = #tpu.dot_dimension_numbers<[1], [0], [0], [1], [0, 0, 1, 1], [], []>} : vector<8x32xf32>, vector<32x96xf32>, vector<8x96xf32> -> vector<8x96xf32>
    %26 = vector.extract_strided_slice %22 {offsets = [0, 0], sizes = [8, 32], strides = [1, 1]} : vector<8x96xf32> to vector<8x32xf32>
    %27 = vector.extract_strided_slice %25 {offsets = [0, 0], sizes = [8, 32], strides = [1, 1]} : vector<8x96xf32> to vector<8x32xf32>
    %28 = arith.addf %26, %27 : vector<8x32xf32>
    %29 = arith.negf %28 : vector<8x32xf32>
    %30 = math.exp %29 : vector<8x32xf32>
    %cst_19 = arith.constant 1.000000e+00 : f32
    %31 = vector.broadcast %cst_19 : f32 to vector<8x32xf32>
    %32 = arith.addf %31, %30 : vector<8x32xf32>
    %33 = arith.divf %31, %32 : vector<8x32xf32>
    %34 = vector.extract_strided_slice %22 {offsets = [0, 32], sizes = [8, 32], strides = [1, 1]} : vector<8x96xf32> to vector<8x32xf32>
    %35 = vector.extract_strided_slice %25 {offsets = [0, 32], sizes = [8, 32], strides = [1, 1]} : vector<8x96xf32> to vector<8x32xf32>
    %36 = arith.addf %34, %35 : vector<8x32xf32>
    %37 = arith.negf %36 : vector<8x32xf32>
    %38 = math.exp %37 : vector<8x32xf32>
    %cst_20 = arith.constant 1.000000e+00 : f32
    %39 = vector.broadcast %cst_20 : f32 to vector<8x32xf32>
    %40 = arith.addf %39, %38 : vector<8x32xf32>
    %41 = arith.divf %39, %40 : vector<8x32xf32>
    %42 = vector.extract_strided_slice %22 {offsets = [0, 64], sizes = [8, 32], strides = [1, 1]} : vector<8x96xf32> to vector<8x32xf32>
    %43 = vector.extract_strided_slice %25 {offsets = [0, 64], sizes = [8, 32], strides = [1, 1]} : vector<8x96xf32> to vector<8x32xf32>
    %44 = arith.addf %43, %11 : vector<8x32xf32>
    %45 = arith.mulf %33, %44 : vector<8x32xf32>
    %46 = arith.addf %42, %45 : vector<8x32xf32>
    %47 = math.tanh %46 : vector<8x32xf32>
    %cst_21 = arith.constant 1.000000e+00 : f32
    %48 = vector.broadcast %cst_21 : f32 to vector<8x32xf32>
    %49 = arith.subf %48, %41 : vector<8x32xf32>
    %50 = arith.mulf %49, %47 : vector<8x32xf32>
    %51 = arith.mulf %41, %15 : vector<8x32xf32>
    %52 = arith.addf %50, %51 : vector<8x32xf32>
    %cst_22 = arith.constant dense<0.000000e+00> : vector<8x96xf32>
    %53 = tpu.matmul %15, %8, %cst_22 {dimension_numbers = #tpu.dot_dimension_numbers<[1], [0], [0], [1], [0, 0, 1, 1], [], []>} : vector<8x32xf32>, vector<32x96xf32>, vector<8x96xf32> -> vector<8x96xf32>
    %54 = vector.extract_strided_slice %24 {offsets = [0, 0], sizes = [8, 32], strides = [1, 1]} : vector<8x96xf32> to vector<8x32xf32>
    %55 = vector.extract_strided_slice %53 {offsets = [0, 0], sizes = [8, 32], strides = [1, 1]} : vector<8x96xf32> to vector<8x32xf32>
    %56 = arith.addf %54, %55 : vector<8x32xf32>
    %57 = arith.negf %56 : vector<8x32xf32>
    %58 = math.exp %57 : vector<8x32xf32>
    %cst_23 = arith.constant 1.000000e+00 : f32
    %59 = vector.broadcast %cst_23 : f32 to vector<8x32xf32>
    %60 = arith.addf %59, %58 : vector<8x32xf32>
    %61 = arith.divf %59, %60 : vector<8x32xf32>
    %62 = vector.extract_strided_slice %24 {offsets = [0, 32], sizes = [8, 32], strides = [1, 1]} : vector<8x96xf32> to vector<8x32xf32>
    %63 = vector.extract_strided_slice %53 {offsets = [0, 32], sizes = [8, 32], strides = [1, 1]} : vector<8x96xf32> to vector<8x32xf32>
    %64 = arith.addf %62, %63 : vector<8x32xf32>
    %65 = arith.negf %64 : vector<8x32xf32>
    %66 = math.exp %65 : vector<8x32xf32>
    %cst_24 = arith.constant 1.000000e+00 : f32
    %67 = vector.broadcast %cst_24 : f32 to vector<8x32xf32>
    %68 = arith.addf %67, %66 : vector<8x32xf32>
    %69 = arith.divf %67, %68 : vector<8x32xf32>
    %70 = vector.extract_strided_slice %24 {offsets = [0, 64], sizes = [8, 32], strides = [1, 1]} : vector<8x96xf32> to vector<8x32xf32>
    %71 = vector.extract_strided_slice %53 {offsets = [0, 64], sizes = [8, 32], strides = [1, 1]} : vector<8x96xf32> to vector<8x32xf32>
    %72 = arith.addf %71, %14 : vector<8x32xf32>
    %73 = arith.mulf %61, %72 : vector<8x32xf32>
    %74 = arith.addf %70, %73 : vector<8x32xf32>
    %75 = math.tanh %74 : vector<8x32xf32>
    %cst_25 = arith.constant 1.000000e+00 : f32
    %76 = vector.broadcast %cst_25 : f32 to vector<8x32xf32>
    %77 = arith.subf %76, %69 : vector<8x32xf32>
    %78 = arith.mulf %77, %75 : vector<8x32xf32>
    %79 = arith.mulf %69, %15 : vector<8x32xf32>
    %80 = arith.addf %78, %79 : vector<8x32xf32>
    %81 = arith.index_cast %c0_i32 : i32 to index
    %c0_26 = arith.constant 0 : index
    %c0_27 = arith.constant 0 : index
    %82 = vector.load %arg1[%81, %c0_26, %c0_27] : memref<8x8x32xf32, #tpu.memory_space<vmem>>, vector<1x8x32xf32>
    %83 = vector.shape_cast %82 : vector<1x8x32xf32> to vector<8x32xf32>
    %84 = arith.index_cast %16 : i32 to index
    %c0_28 = arith.constant 0 : index
    %c0_29 = arith.constant 0 : index
    %85 = vector.load %arg1[%84, %c0_28, %c0_29] : memref<8x8x32xf32, #tpu.memory_space<vmem>>, vector<1x8x32xf32>
    %86 = vector.shape_cast %85 : vector<1x8x32xf32> to vector<8x32xf32>
    %87 = arith.mulf %52, %83 : vector<8x32xf32>
    %88 = arith.mulf %80, %86 : vector<8x32xf32>
    %89 = arith.index_cast %c0_i32 : i32 to index
    %c0_30 = arith.constant 0 : index
    %c0_31 = arith.constant 0 : index
    %90 = vector.load %arg11[%89, %c0_30, %c0_31] : memref<8x8x64xf32, #tpu.memory_space<vmem>>, vector<1x8x32xf32>
    %91 = vector.shape_cast %90 : vector<1x8x32xf32> to vector<8x32xf32>
    %92 = vector.shape_cast %87 : vector<8x32xf32> to vector<1x8x32xf32>
    tpu.vector_store %arg11[%89, %c0_30, %c0_31], %92 {strides = array<i32>} : memref<8x8x64xf32, #tpu.memory_space<vmem>>, vector<1x8x32xf32>,
    %93 = arith.index_cast %16 : i32 to index
    %c0_32 = arith.constant 0 : index
    %c32 = arith.constant 32 : index
    %94 = vector.load %arg11[%93, %c0_32, %c32] : memref<8x8x64xf32, #tpu.memory_space<vmem>>, vector<1x8x32xf32>
    %95 = vector.shape_cast %94 : vector<1x8x32xf32> to vector<8x32xf32>
    %96 = vector.shape_cast %88 : vector<8x32xf32> to vector<1x8x32xf32>
    tpu.vector_store %arg11[%93, %c0_32, %c32], %96 {strides = array<i32>} : memref<8x8x64xf32, #tpu.memory_space<vmem>>, vector<1x8x32xf32>,
    %cst_33 = arith.constant 1.000000e+00 : f32
    %97 = vector.broadcast %cst_33 : f32 to vector<8x32xf32>
    %98 = arith.subf %97, %83 : vector<8x32xf32>
    %99 = arith.mulf %15, %98 : vector<8x32xf32>
    %100 = arith.addf %87, %99 : vector<8x32xf32>
    %cst_34 = arith.constant 1.000000e+00 : f32
    %101 = vector.broadcast %cst_34 : f32 to vector<8x32xf32>
    %102 = arith.subf %101, %86 : vector<8x32xf32>
    %103 = arith.mulf %15, %102 : vector<8x32xf32>
    %104 = arith.addf %88, %103 : vector<8x32xf32>
    %c1_i32 = arith.constant 1 : i32
    %c7_i32_35 = arith.constant 7 : i32
    %105 = arith.subi %c7_i32_35, %c1_i32 : i32
    %c8_i32_36 = arith.constant 8 : i32
    %106 = arith.muli %c1_i32, %c8_i32_36 : i32
    %107 = tpu.assume_multiple %106, 8 : i32
    %c8_i32_37 = arith.constant 8 : i32
    %108 = arith.muli %105, %c8_i32_37 : i32
    %109 = tpu.assume_multiple %108, 8 : i32
    %110 = arith.index_cast %107 : i32 to index
    %c0_38 = arith.constant 0 : index
    %111 = vector.load %arg13[%110, %c0_38] : memref<64x256xf32, #tpu.memory_space<vmem>>, vector<8x96xf32>
    %112 = arith.index_cast %109 : i32 to index
    %c128_39 = arith.constant 128 : index
    %113 = vector.load %arg13[%112, %c128_39] : memref<64x256xf32, #tpu.memory_space<vmem>>, vector<8x96xf32>
    %cst_40 = arith.constant dense<0.000000e+00> : vector<8x96xf32>
    %114 = tpu.matmul %100, %7, %cst_40 {dimension_numbers = #tpu.dot_dimension_numbers<[1], [0], [0], [1], [0, 0, 1, 1], [], []>} : vector<8x32xf32>, vector<32x96xf32>, vector<8x96xf32> -> vector<8x96xf32>
    %115 = vector.extract_strided_slice %111 {offsets = [0, 0], sizes = [8, 32], strides = [1, 1]} : vector<8x96xf32> to vector<8x32xf32>
    %116 = vector.extract_strided_slice %114 {offsets = [0, 0], sizes = [8, 32], strides = [1, 1]} : vector<8x96xf32> to vector<8x32xf32>
    %117 = arith.addf %115, %116 : vector<8x32xf32>
    %118 = arith.negf %117 : vector<8x32xf32>
    %119 = math.exp %118 : vector<8x32xf32>
    %cst_41 = arith.constant 1.000000e+00 : f32
    %120 = vector.broadcast %cst_41 : f32 to vector<8x32xf32>
    %121 = arith.addf %120, %119 : vector<8x32xf32>
    %122 = arith.divf %120, %121 : vector<8x32xf32>
    %123 = vector.extract_strided_slice %111 {offsets = [0, 32], sizes = [8, 32], strides = [1, 1]} : vector<8x96xf32> to vector<8x32xf32>
    %124 = vector.extract_strided_slice %114 {offsets = [0, 32], sizes = [8, 32], strides = [1, 1]} : vector<8x96xf32> to vector<8x32xf32>
    %125 = arith.addf %123, %124 : vector<8x32xf32>
    %126 = arith.negf %125 : vector<8x32xf32>
    %127 = math.exp %126 : vector<8x32xf32>
    %cst_42 = arith.constant 1.000000e+00 : f32
    %128 = vector.broadcast %cst_42 : f32 to vector<8x32xf32>
    %129 = arith.addf %128, %127 : vector<8x32xf32>
    %130 = arith.divf %128, %129 : vector<8x32xf32>
    %131 = vector.extract_strided_slice %111 {offsets = [0, 64], sizes = [8, 32], strides = [1, 1]} : vector<8x96xf32> to vector<8x32xf32>
    %132 = vector.extract_strided_slice %114 {offsets = [0, 64], sizes = [8, 32], strides = [1, 1]} : vector<8x96xf32> to vector<8x32xf32>
    %133 = arith.addf %132, %11 : vector<8x32xf32>
    %134 = arith.mulf %122, %133 : vector<8x32xf32>
    %135 = arith.addf %131, %134 : vector<8x32xf32>
    %136 = math.tanh %135 : vector<8x32xf32>
    %cst_43 = arith.constant 1.000000e+00 : f32
    %137 = vector.broadcast %cst_43 : f32 to vector<8x32xf32>
    %138 = arith.subf %137, %130 : vector<8x32xf32>
    %139 = arith.mulf %138, %136 : vector<8x32xf32>
    %140 = arith.mulf %130, %100 : vector<8x32xf32>
    %141 = arith.addf %139, %140 : vector<8x32xf32>
    %cst_44 = arith.constant dense<0.000000e+00> : vector<8x96xf32>
    %142 = tpu.matmul %104, %8, %cst_44 {dimension_numbers = #tpu.dot_dimension_numbers<[1], [0], [0], [1], [0, 0, 1, 1], [], []>} : vector<8x32xf32>, vector<32x96xf32>, vector<8x96xf32> -> vector<8x96xf32>
    %143 = vector.extract_strided_slice %113 {offsets = [0, 0], sizes = [8, 32], strides = [1, 1]} : vector<8x96xf32> to vector<8x32xf32>
    %144 = vector.extract_strided_slice %142 {offsets = [0, 0], sizes = [8, 32], strides = [1, 1]} : vector<8x96xf32> to vector<8x32xf32>
    %145 = arith.addf %143, %144 : vector<8x32xf32>
    %146 = arith.negf %145 : vector<8x32xf32>
    %147 = math.exp %146 : vector<8x32xf32>
    %cst_45 = arith.constant 1.000000e+00 : f32
    %148 = vector.broadcast %cst_45 : f32 to vector<8x32xf32>
    %149 = arith.addf %148, %147 : vector<8x32xf32>
    %150 = arith.divf %148, %149 : vector<8x32xf32>
    %151 = vector.extract_strided_slice %113 {offsets = [0, 32], sizes = [8, 32], strides = [1, 1]} : vector<8x96xf32> to vector<8x32xf32>
    %152 = vector.extract_strided_slice %142 {offsets = [0, 32], sizes = [8, 32], strides = [1, 1]} : vector<8x96xf32> to vector<8x32xf32>
    %153 = arith.addf %151, %152 : vector<8x32xf32>
    %154 = arith.negf %153 : vector<8x32xf32>
    %155 = math.exp %154 : vector<8x32xf32>
    %cst_46 = arith.constant 1.000000e+00 : f32
    %156 = vector.broadcast %cst_46 : f32 to vector<8x32xf32>
    %157 = arith.addf %156, %155 : vector<8x32xf32>
    %158 = arith.divf %156, %157 : vector<8x32xf32>
    %159 = vector.extract_strided_slice %113 {offsets = [0, 64], sizes = [8, 32], strides = [1, 1]} : vector<8x96xf32> to vector<8x32xf32>
    %160 = vector.extract_strided_slice %142 {offsets = [0, 64], sizes = [8, 32], strides = [1, 1]} : vector<8x96xf32> to vector<8x32xf32>
    %161 = arith.addf %160, %14 : vector<8x32xf32>
    %162 = arith.mulf %150, %161 : vector<8x32xf32>
    %163 = arith.addf %159, %162 : vector<8x32xf32>
    %164 = math.tanh %163 : vector<8x32xf32>
    %cst_47 = arith.constant 1.000000e+00 : f32
    %165 = vector.broadcast %cst_47 : f32 to vector<8x32xf32>
    %166 = arith.subf %165, %158 : vector<8x32xf32>
    %167 = arith.mulf %166, %164 : vector<8x32xf32>
    %168 = arith.mulf %158, %104 : vector<8x32xf32>
    %169 = arith.addf %167, %168 : vector<8x32xf32>
    %170 = arith.index_cast %c1_i32 : i32 to index
    %c0_48 = arith.constant 0 : index
    %c0_49 = arith.constant 0 : index
    %171 = vector.load %arg1[%170, %c0_48, %c0_49] : memref<8x8x32xf32, #tpu.memory_space<vmem>>, vector<1x8x32xf32>
    %172 = vector.shape_cast %171 : vector<1x8x32xf32> to vector<8x32xf32>
    %173 = arith.index_cast %105 : i32 to index
    %c0_50 = arith.constant 0 : index
    %c0_51 = arith.constant 0 : index
    %174 = vector.load %arg1[%173, %c0_50, %c0_51] : memref<8x8x32xf32, #tpu.memory_space<vmem>>, vector<1x8x32xf32>
    %175 = vector.shape_cast %174 : vector<1x8x32xf32> to vector<8x32xf32>
    %176 = arith.mulf %141, %172 : vector<8x32xf32>
    %177 = arith.mulf %169, %175 : vector<8x32xf32>
    %178 = arith.index_cast %c1_i32 : i32 to index
    %c0_52 = arith.constant 0 : index
    %c0_53 = arith.constant 0 : index
    %179 = vector.load %arg11[%178, %c0_52, %c0_53] : memref<8x8x64xf32, #tpu.memory_space<vmem>>, vector<1x8x32xf32>
    %180 = vector.shape_cast %179 : vector<1x8x32xf32> to vector<8x32xf32>
    %181 = vector.shape_cast %176 : vector<8x32xf32> to vector<1x8x32xf32>
    tpu.vector_store %arg11[%178, %c0_52, %c0_53], %181 {strides = array<i32>} : memref<8x8x64xf32, #tpu.memory_space<vmem>>, vector<1x8x32xf32>,
    %182 = arith.index_cast %105 : i32 to index
    %c0_54 = arith.constant 0 : index
    %c32_55 = arith.constant 32 : index
    %183 = vector.load %arg11[%182, %c0_54, %c32_55] : memref<8x8x64xf32, #tpu.memory_space<vmem>>, vector<1x8x32xf32>
    %184 = vector.shape_cast %183 : vector<1x8x32xf32> to vector<8x32xf32>
    %185 = vector.shape_cast %177 : vector<8x32xf32> to vector<1x8x32xf32>
    tpu.vector_store %arg11[%182, %c0_54, %c32_55], %185 {strides = array<i32>} : memref<8x8x64xf32, #tpu.memory_space<vmem>>, vector<1x8x32xf32>,
    %cst_56 = arith.constant 1.000000e+00 : f32
    %186 = vector.broadcast %cst_56 : f32 to vector<8x32xf32>
    %187 = arith.subf %186, %172 : vector<8x32xf32>
    %188 = arith.mulf %100, %187 : vector<8x32xf32>
    %189 = arith.addf %176, %188 : vector<8x32xf32>
    %cst_57 = arith.constant 1.000000e+00 : f32
    %190 = vector.broadcast %cst_57 : f32 to vector<8x32xf32>
    %191 = arith.subf %190, %175 : vector<8x32xf32>
    %192 = arith.mulf %104, %191 : vector<8x32xf32>
    %193 = arith.addf %177, %192 : vector<8x32xf32>
    %c2_i32 = arith.constant 2 : i32
    %c7_i32_58 = arith.constant 7 : i32
    %194 = arith.subi %c7_i32_58, %c2_i32 : i32
    %c8_i32_59 = arith.constant 8 : i32
    %195 = arith.muli %c2_i32, %c8_i32_59 : i32
    %196 = tpu.assume_multiple %195, 8 : i32
    %c8_i32_60 = arith.constant 8 : i32
    %197 = arith.muli %194, %c8_i32_60 : i32
    %198 = tpu.assume_multiple %197, 8 : i32
    %199 = arith.index_cast %196 : i32 to index
    %c0_61 = arith.constant 0 : index
    %200 = vector.load %arg13[%199, %c0_61] : memref<64x256xf32, #tpu.memory_space<vmem>>, vector<8x96xf32>
    %201 = arith.index_cast %198 : i32 to index
    %c128_62 = arith.constant 128 : index
    %202 = vector.load %arg13[%201, %c128_62] : memref<64x256xf32, #tpu.memory_space<vmem>>, vector<8x96xf32>
    %cst_63 = arith.constant dense<0.000000e+00> : vector<8x96xf32>
    %203 = tpu.matmul %189, %7, %cst_63 {dimension_numbers = #tpu.dot_dimension_numbers<[1], [0], [0], [1], [0, 0, 1, 1], [], []>} : vector<8x32xf32>, vector<32x96xf32>, vector<8x96xf32> -> vector<8x96xf32>
    %204 = vector.extract_strided_slice %200 {offsets = [0, 0], sizes = [8, 32], strides = [1, 1]} : vector<8x96xf32> to vector<8x32xf32>
    %205 = vector.extract_strided_slice %203 {offsets = [0, 0], sizes = [8, 32], strides = [1, 1]} : vector<8x96xf32> to vector<8x32xf32>
    %206 = arith.addf %204, %205 : vector<8x32xf32>
    %207 = arith.negf %206 : vector<8x32xf32>
    %208 = math.exp %207 : vector<8x32xf32>
    %cst_64 = arith.constant 1.000000e+00 : f32
    %209 = vector.broadcast %cst_64 : f32 to vector<8x32xf32>
    %210 = arith.addf %209, %208 : vector<8x32xf32>
    %211 = arith.divf %209, %210 : vector<8x32xf32>
    %212 = vector.extract_strided_slice %200 {offsets = [0, 32], sizes = [8, 32], strides = [1, 1]} : vector<8x96xf32> to vector<8x32xf32>
    %213 = vector.extract_strided_slice %203 {offsets = [0, 32], sizes = [8, 32], strides = [1, 1]} : vector<8x96xf32> to vector<8x32xf32>
    %214 = arith.addf %212, %213 : vector<8x32xf32>
    %215 = arith.negf %214 : vector<8x32xf32>
    %216 = math.exp %215 : vector<8x32xf32>
    %cst_65 = arith.constant 1.000000e+00 : f32
    %217 = vector.broadcast %cst_65 : f32 to vector<8x32xf32>
    %218 = arith.addf %217, %216 : vector<8x32xf32>
    %219 = arith.divf %217, %218 : vector<8x32xf32>
    %220 = vector.extract_strided_slice %200 {offsets = [0, 64], sizes = [8, 32], strides = [1, 1]} : vector<8x96xf32> to vector<8x32xf32>
    %221 = vector.extract_strided_slice %203 {offsets = [0, 64], sizes = [8, 32], strides = [1, 1]} : vector<8x96xf32> to vector<8x32xf32>
    %222 = arith.addf %221, %11 : vector<8x32xf32>
    %223 = arith.mulf %211, %222 : vector<8x32xf32>
    %224 = arith.addf %220, %223 : vector<8x32xf32>
    %225 = math.tanh %224 : vector<8x32xf32>
    %cst_66 = arith.constant 1.000000e+00 : f32
    %226 = vector.broadcast %cst_66 : f32 to vector<8x32xf32>
    %227 = arith.subf %226, %219 : vector<8x32xf32>
    %228 = arith.mulf %227, %225 : vector<8x32xf32>
    %229 = arith.mulf %219, %189 : vector<8x32xf32>
    %230 = arith.addf %228, %229 : vector<8x32xf32>
    %cst_67 = arith.constant dense<0.000000e+00> : vector<8x96xf32>
    %231 = tpu.matmul %193, %8, %cst_67 {dimension_numbers = #tpu.dot_dimension_numbers<[1], [0], [0], [1], [0, 0, 1, 1], [], []>} : vector<8x32xf32>, vector<32x96xf32>, vector<8x96xf32> -> vector<8x96xf32>
    %232 = vector.extract_strided_slice %202 {offsets = [0, 0], sizes = [8, 32], strides = [1, 1]} : vector<8x96xf32> to vector<8x32xf32>
    %233 = vector.extract_strided_slice %231 {offsets = [0, 0], sizes = [8, 32], strides = [1, 1]} : vector<8x96xf32> to vector<8x32xf32>
    %234 = arith.addf %232, %233 : vector<8x32xf32>
    %235 = arith.negf %234 : vector<8x32xf32>
    %236 = math.exp %235 : vector<8x32xf32>
    %cst_68 = arith.constant 1.000000e+00 : f32
    %237 = vector.broadcast %cst_68 : f32 to vector<8x32xf32>
    %238 = arith.addf %237, %236 : vector<8x32xf32>
    %239 = arith.divf %237, %238 : vector<8x32xf32>
    %240 = vector.extract_strided_slice %202 {offsets = [0, 32], sizes = [8, 32], strides = [1, 1]} : vector<8x96xf32> to vector<8x32xf32>
    %241 = vector.extract_strided_slice %231 {offsets = [0, 32], sizes = [8, 32], strides = [1, 1]} : vector<8x96xf32> to vector<8x32xf32>
    %242 = arith.addf %240, %241 : vector<8x32xf32>
    %243 = arith.negf %242 : vector<8x32xf32>
    %244 = math.exp %243 : vector<8x32xf32>
    %cst_69 = arith.constant 1.000000e+00 : f32
    %245 = vector.broadcast %cst_69 : f32 to vector<8x32xf32>
    %246 = arith.addf %245, %244 : vector<8x32xf32>
    %247 = arith.divf %245, %246 : vector<8x32xf32>
    %248 = vector.extract_strided_slice %202 {offsets = [0, 64], sizes = [8, 32], strides = [1, 1]} : vector<8x96xf32> to vector<8x32xf32>
    %249 = vector.extract_strided_slice %231 {offsets = [0, 64], sizes = [8, 32], strides = [1, 1]} : vector<8x96xf32> to vector<8x32xf32>
    %250 = arith.addf %249, %14 : vector<8x32xf32>
    %251 = arith.mulf %239, %250 : vector<8x32xf32>
    %252 = arith.addf %248, %251 : vector<8x32xf32>
    %253 = math.tanh %252 : vector<8x32xf32>
    %cst_70 = arith.constant 1.000000e+00 : f32
    %254 = vector.broadcast %cst_70 : f32 to vector<8x32xf32>
    %255 = arith.subf %254, %247 : vector<8x32xf32>
    %256 = arith.mulf %255, %253 : vector<8x32xf32>
    %257 = arith.mulf %247, %193 : vector<8x32xf32>
    %258 = arith.addf %256, %257 : vector<8x32xf32>
    %259 = arith.index_cast %c2_i32 : i32 to index
    %c0_71 = arith.constant 0 : index
    %c0_72 = arith.constant 0 : index
    %260 = vector.load %arg1[%259, %c0_71, %c0_72] : memref<8x8x32xf32, #tpu.memory_space<vmem>>, vector<1x8x32xf32>
    %261 = vector.shape_cast %260 : vector<1x8x32xf32> to vector<8x32xf32>
    %262 = arith.index_cast %194 : i32 to index
    %c0_73 = arith.constant 0 : index
    %c0_74 = arith.constant 0 : index
    %263 = vector.load %arg1[%262, %c0_73, %c0_74] : memref<8x8x32xf32, #tpu.memory_space<vmem>>, vector<1x8x32xf32>
    %264 = vector.shape_cast %263 : vector<1x8x32xf32> to vector<8x32xf32>
    %265 = arith.mulf %230, %261 : vector<8x32xf32>
    %266 = arith.mulf %258, %264 : vector<8x32xf32>
    %267 = arith.index_cast %c2_i32 : i32 to index
    %c0_75 = arith.constant 0 : index
    %c0_76 = arith.constant 0 : index
    %268 = vector.load %arg11[%267, %c0_75, %c0_76] : memref<8x8x64xf32, #tpu.memory_space<vmem>>, vector<1x8x32xf32>
    %269 = vector.shape_cast %268 : vector<1x8x32xf32> to vector<8x32xf32>
    %270 = vector.shape_cast %265 : vector<8x32xf32> to vector<1x8x32xf32>
    tpu.vector_store %arg11[%267, %c0_75, %c0_76], %270 {strides = array<i32>} : memref<8x8x64xf32, #tpu.memory_space<vmem>>, vector<1x8x32xf32>,
    %271 = arith.index_cast %194 : i32 to index
    %c0_77 = arith.constant 0 : index
    %c32_78 = arith.constant 32 : index
    %272 = vector.load %arg11[%271, %c0_77, %c32_78] : memref<8x8x64xf32, #tpu.memory_space<vmem>>, vector<1x8x32xf32>
    %273 = vector.shape_cast %272 : vector<1x8x32xf32> to vector<8x32xf32>
    %274 = vector.shape_cast %266 : vector<8x32xf32> to vector<1x8x32xf32>
    tpu.vector_store %arg11[%271, %c0_77, %c32_78], %274 {strides = array<i32>} : memref<8x8x64xf32, #tpu.memory_space<vmem>>, vector<1x8x32xf32>,
    %cst_79 = arith.constant 1.000000e+00 : f32
    %275 = vector.broadcast %cst_79 : f32 to vector<8x32xf32>
    %276 = arith.subf %275, %261 : vector<8x32xf32>
    %277 = arith.mulf %189, %276 : vector<8x32xf32>
    %278 = arith.addf %265, %277 : vector<8x32xf32>
    %cst_80 = arith.constant 1.000000e+00 : f32
    %279 = vector.broadcast %cst_80 : f32 to vector<8x32xf32>
    %280 = arith.subf %279, %264 : vector<8x32xf32>
    %281 = arith.mulf %193, %280 : vector<8x32xf32>
    %282 = arith.addf %266, %281 : vector<8x32xf32>
    %c3_i32 = arith.constant 3 : i32
    %c7_i32_81 = arith.constant 7 : i32
    %283 = arith.subi %c7_i32_81, %c3_i32 : i32
    %c8_i32_82 = arith.constant 8 : i32
    %284 = arith.muli %c3_i32, %c8_i32_82 : i32
    %285 = tpu.assume_multiple %284, 8 : i32
    %c8_i32_83 = arith.constant 8 : i32
    %286 = arith.muli %283, %c8_i32_83 : i32
    %287 = tpu.assume_multiple %286, 8 : i32
    %288 = arith.index_cast %285 : i32 to index
    %c0_84 = arith.constant 0 : index
    %289 = vector.load %arg13[%288, %c0_84] : memref<64x256xf32, #tpu.memory_space<vmem>>, vector<8x96xf32>
    %290 = arith.index_cast %287 : i32 to index
    %c128_85 = arith.constant 128 : index
    %291 = vector.load %arg13[%290, %c128_85] : memref<64x256xf32, #tpu.memory_space<vmem>>, vector<8x96xf32>
    %cst_86 = arith.constant dense<0.000000e+00> : vector<8x96xf32>
    %292 = tpu.matmul %278, %7, %cst_86 {dimension_numbers = #tpu.dot_dimension_numbers<[1], [0], [0], [1], [0, 0, 1, 1], [], []>} : vector<8x32xf32>, vector<32x96xf32>, vector<8x96xf32> -> vector<8x96xf32>
    %293 = vector.extract_strided_slice %289 {offsets = [0, 0], sizes = [8, 32], strides = [1, 1]} : vector<8x96xf32> to vector<8x32xf32>
    %294 = vector.extract_strided_slice %292 {offsets = [0, 0], sizes = [8, 32], strides = [1, 1]} : vector<8x96xf32> to vector<8x32xf32>
    %295 = arith.addf %293, %294 : vector<8x32xf32>
    %296 = arith.negf %295 : vector<8x32xf32>
    %297 = math.exp %296 : vector<8x32xf32>
    %cst_87 = arith.constant 1.000000e+00 : f32
    %298 = vector.broadcast %cst_87 : f32 to vector<8x32xf32>
    %299 = arith.addf %298, %297 : vector<8x32xf32>
    %300 = arith.divf %298, %299 : vector<8x32xf32>
    %301 = vector.extract_strided_slice %289 {offsets = [0, 32], sizes = [8, 32], strides = [1, 1]} : vector<8x96xf32> to vector<8x32xf32>
    %302 = vector.extract_strided_slice %292 {offsets = [0, 32], sizes = [8, 32], strides = [1, 1]} : vector<8x96xf32> to vector<8x32xf32>
    %303 = arith.addf %301, %302 : vector<8x32xf32>
    %304 = arith.negf %303 : vector<8x32xf32>
    %305 = math.exp %304 : vector<8x32xf32>
    %cst_88 = arith.constant 1.000000e+00 : f32
    %306 = vector.broadcast %cst_88 : f32 to vector<8x32xf32>
    %307 = arith.addf %306, %305 : vector<8x32xf32>
    %308 = arith.divf %306, %307 : vector<8x32xf32>
    %309 = vector.extract_strided_slice %289 {offsets = [0, 64], sizes = [8, 32], strides = [1, 1]} : vector<8x96xf32> to vector<8x32xf32>
    %310 = vector.extract_strided_slice %292 {offsets = [0, 64], sizes = [8, 32], strides = [1, 1]} : vector<8x96xf32> to vector<8x32xf32>
    %311 = arith.addf %310, %11 : vector<8x32xf32>
    %312 = arith.mulf %300, %311 : vector<8x32xf32>
    %313 = arith.addf %309, %312 : vector<8x32xf32>
    %314 = math.tanh %313 : vector<8x32xf32>
    %cst_89 = arith.constant 1.000000e+00 : f32
    %315 = vector.broadcast %cst_89 : f32 to vector<8x32xf32>
    %316 = arith.subf %315, %308 : vector<8x32xf32>
    %317 = arith.mulf %316, %314 : vector<8x32xf32>
    %318 = arith.mulf %308, %278 : vector<8x32xf32>
    %319 = arith.addf %317, %318 : vector<8x32xf32>
    %cst_90 = arith.constant dense<0.000000e+00> : vector<8x96xf32>
    %320 = tpu.matmul %282, %8, %cst_90 {dimension_numbers = #tpu.dot_dimension_numbers<[1], [0], [0], [1], [0, 0, 1, 1], [], []>} : vector<8x32xf32>, vector<32x96xf32>, vector<8x96xf32> -> vector<8x96xf32>
    %321 = vector.extract_strided_slice %291 {offsets = [0, 0], sizes = [8, 32], strides = [1, 1]} : vector<8x96xf32> to vector<8x32xf32>
    %322 = vector.extract_strided_slice %320 {offsets = [0, 0], sizes = [8, 32], strides = [1, 1]} : vector<8x96xf32> to vector<8x32xf32>
    %323 = arith.addf %321, %322 : vector<8x32xf32>
    %324 = arith.negf %323 : vector<8x32xf32>
    %325 = math.exp %324 : vector<8x32xf32>
    %cst_91 = arith.constant 1.000000e+00 : f32
    %326 = vector.broadcast %cst_91 : f32 to vector<8x32xf32>
    %327 = arith.addf %326, %325 : vector<8x32xf32>
    %328 = arith.divf %326, %327 : vector<8x32xf32>
    %329 = vector.extract_strided_slice %291 {offsets = [0, 32], sizes = [8, 32], strides = [1, 1]} : vector<8x96xf32> to vector<8x32xf32>
    %330 = vector.extract_strided_slice %320 {offsets = [0, 32], sizes = [8, 32], strides = [1, 1]} : vector<8x96xf32> to vector<8x32xf32>
    %331 = arith.addf %329, %330 : vector<8x32xf32>
    %332 = arith.negf %331 : vector<8x32xf32>
    %333 = math.exp %332 : vector<8x32xf32>
    %cst_92 = arith.constant 1.000000e+00 : f32
    %334 = vector.broadcast %cst_92 : f32 to vector<8x32xf32>
    %335 = arith.addf %334, %333 : vector<8x32xf32>
    %336 = arith.divf %334, %335 : vector<8x32xf32>
    %337 = vector.extract_strided_slice %291 {offsets = [0, 64], sizes = [8, 32], strides = [1, 1]} : vector<8x96xf32> to vector<8x32xf32>
    %338 = vector.extract_strided_slice %320 {offsets = [0, 64], sizes = [8, 32], strides = [1, 1]} : vector<8x96xf32> to vector<8x32xf32>
    %339 = arith.addf %338, %14 : vector<8x32xf32>
    %340 = arith.mulf %328, %339 : vector<8x32xf32>
    %341 = arith.addf %337, %340 : vector<8x32xf32>
    %342 = math.tanh %341 : vector<8x32xf32>
    %cst_93 = arith.constant 1.000000e+00 : f32
    %343 = vector.broadcast %cst_93 : f32 to vector<8x32xf32>
    %344 = arith.subf %343, %336 : vector<8x32xf32>
    %345 = arith.mulf %344, %342 : vector<8x32xf32>
    %346 = arith.mulf %336, %282 : vector<8x32xf32>
    %347 = arith.addf %345, %346 : vector<8x32xf32>
    %348 = arith.index_cast %c3_i32 : i32 to index
    %c0_94 = arith.constant 0 : index
    %c0_95 = arith.constant 0 : index
    %349 = vector.load %arg1[%348, %c0_94, %c0_95] : memref<8x8x32xf32, #tpu.memory_space<vmem>>, vector<1x8x32xf32>
    %350 = vector.shape_cast %349 : vector<1x8x32xf32> to vector<8x32xf32>
    %351 = arith.index_cast %283 : i32 to index
    %c0_96 = arith.constant 0 : index
    %c0_97 = arith.constant 0 : index
    %352 = vector.load %arg1[%351, %c0_96, %c0_97] : memref<8x8x32xf32, #tpu.memory_space<vmem>>, vector<1x8x32xf32>
    %353 = vector.shape_cast %352 : vector<1x8x32xf32> to vector<8x32xf32>
    %354 = arith.mulf %319, %350 : vector<8x32xf32>
    %355 = arith.mulf %347, %353 : vector<8x32xf32>
    %356 = arith.index_cast %c3_i32 : i32 to index
    %c0_98 = arith.constant 0 : index
    %c0_99 = arith.constant 0 : index
    %357 = vector.load %arg11[%356, %c0_98, %c0_99] : memref<8x8x64xf32, #tpu.memory_space<vmem>>, vector<1x8x32xf32>
    %358 = vector.shape_cast %357 : vector<1x8x32xf32> to vector<8x32xf32>
    %359 = vector.shape_cast %354 : vector<8x32xf32> to vector<1x8x32xf32>
    tpu.vector_store %arg11[%356, %c0_98, %c0_99], %359 {strides = array<i32>} : memref<8x8x64xf32, #tpu.memory_space<vmem>>, vector<1x8x32xf32>,
    %360 = arith.index_cast %283 : i32 to index
    %c0_100 = arith.constant 0 : index
    %c32_101 = arith.constant 32 : index
    %361 = vector.load %arg11[%360, %c0_100, %c32_101] : memref<8x8x64xf32, #tpu.memory_space<vmem>>, vector<1x8x32xf32>
    %362 = vector.shape_cast %361 : vector<1x8x32xf32> to vector<8x32xf32>
    %363 = vector.shape_cast %355 : vector<8x32xf32> to vector<1x8x32xf32>
    tpu.vector_store %arg11[%360, %c0_100, %c32_101], %363 {strides = array<i32>} : memref<8x8x64xf32, #tpu.memory_space<vmem>>, vector<1x8x32xf32>,
    %cst_102 = arith.constant 1.000000e+00 : f32
    %364 = vector.broadcast %cst_102 : f32 to vector<8x32xf32>
    %365 = arith.subf %364, %350 : vector<8x32xf32>
    %366 = arith.mulf %278, %365 : vector<8x32xf32>
    %367 = arith.addf %354, %366 : vector<8x32xf32>
    %cst_103 = arith.constant 1.000000e+00 : f32
    %368 = vector.broadcast %cst_103 : f32 to vector<8x32xf32>
    %369 = arith.subf %368, %353 : vector<8x32xf32>
    %370 = arith.mulf %282, %369 : vector<8x32xf32>
    %371 = arith.addf %355, %370 : vector<8x32xf32>
    %c4_i32 = arith.constant 4 : i32
    %c7_i32_104 = arith.constant 7 : i32
    %372 = arith.subi %c7_i32_104, %c4_i32 : i32
    %c8_i32_105 = arith.constant 8 : i32
    %373 = arith.muli %c4_i32, %c8_i32_105 : i32
    %374 = tpu.assume_multiple %373, 8 : i32
    %c8_i32_106 = arith.constant 8 : i32
    %375 = arith.muli %372, %c8_i32_106 : i32
    %376 = tpu.assume_multiple %375, 8 : i32
    %377 = arith.index_cast %374 : i32 to index
    %c0_107 = arith.constant 0 : index
    %378 = vector.load %arg13[%377, %c0_107] : memref<64x256xf32, #tpu.memory_space<vmem>>, vector<8x96xf32>
    %379 = arith.index_cast %376 : i32 to index
    %c128_108 = arith.constant 128 : index
    %380 = vector.load %arg13[%379, %c128_108] : memref<64x256xf32, #tpu.memory_space<vmem>>, vector<8x96xf32>
    %cst_109 = arith.constant dense<0.000000e+00> : vector<8x96xf32>
    %381 = tpu.matmul %367, %7, %cst_109 {dimension_numbers = #tpu.dot_dimension_numbers<[1], [0], [0], [1], [0, 0, 1, 1], [], []>} : vector<8x32xf32>, vector<32x96xf32>, vector<8x96xf32> -> vector<8x96xf32>
    %382 = vector.extract_strided_slice %378 {offsets = [0, 0], sizes = [8, 32], strides = [1, 1]} : vector<8x96xf32> to vector<8x32xf32>
    %383 = vector.extract_strided_slice %381 {offsets = [0, 0], sizes = [8, 32], strides = [1, 1]} : vector<8x96xf32> to vector<8x32xf32>
    %384 = arith.addf %382, %383 : vector<8x32xf32>
    %385 = arith.negf %384 : vector<8x32xf32>
    %386 = math.exp %385 : vector<8x32xf32>
    %cst_110 = arith.constant 1.000000e+00 : f32
    %387 = vector.broadcast %cst_110 : f32 to vector<8x32xf32>
    %388 = arith.addf %387, %386 : vector<8x32xf32>
    %389 = arith.divf %387, %388 : vector<8x32xf32>
    %390 = vector.extract_strided_slice %378 {offsets = [0, 32], sizes = [8, 32], strides = [1, 1]} : vector<8x96xf32> to vector<8x32xf32>
    %391 = vector.extract_strided_slice %381 {offsets = [0, 32], sizes = [8, 32], strides = [1, 1]} : vector<8x96xf32> to vector<8x32xf32>
    %392 = arith.addf %390, %391 : vector<8x32xf32>
    %393 = arith.negf %392 : vector<8x32xf32>
    %394 = math.exp %393 : vector<8x32xf32>
    %cst_111 = arith.constant 1.000000e+00 : f32
    %395 = vector.broadcast %cst_111 : f32 to vector<8x32xf32>
    %396 = arith.addf %395, %394 : vector<8x32xf32>
    %397 = arith.divf %395, %396 : vector<8x32xf32>
    %398 = vector.extract_strided_slice %378 {offsets = [0, 64], sizes = [8, 32], strides = [1, 1]} : vector<8x96xf32> to vector<8x32xf32>
    %399 = vector.extract_strided_slice %381 {offsets = [0, 64], sizes = [8, 32], strides = [1, 1]} : vector<8x96xf32> to vector<8x32xf32>
    %400 = arith.addf %399, %11 : vector<8x32xf32>
    %401 = arith.mulf %389, %400 : vector<8x32xf32>
    %402 = arith.addf %398, %401 : vector<8x32xf32>
    %403 = math.tanh %402 : vector<8x32xf32>
    %cst_112 = arith.constant 1.000000e+00 : f32
    %404 = vector.broadcast %cst_112 : f32 to vector<8x32xf32>
    %405 = arith.subf %404, %397 : vector<8x32xf32>
    %406 = arith.mulf %405, %403 : vector<8x32xf32>
    %407 = arith.mulf %397, %367 : vector<8x32xf32>
    %408 = arith.addf %406, %407 : vector<8x32xf32>
    %cst_113 = arith.constant dense<0.000000e+00> : vector<8x96xf32>
    %409 = tpu.matmul %371, %8, %cst_113 {dimension_numbers = #tpu.dot_dimension_numbers<[1], [0], [0], [1], [0, 0, 1, 1], [], []>} : vector<8x32xf32>, vector<32x96xf32>, vector<8x96xf32> -> vector<8x96xf32>
    %410 = vector.extract_strided_slice %380 {offsets = [0, 0], sizes = [8, 32], strides = [1, 1]} : vector<8x96xf32> to vector<8x32xf32>
    %411 = vector.extract_strided_slice %409 {offsets = [0, 0], sizes = [8, 32], strides = [1, 1]} : vector<8x96xf32> to vector<8x32xf32>
    %412 = arith.addf %410, %411 : vector<8x32xf32>
    %413 = arith.negf %412 : vector<8x32xf32>
    %414 = math.exp %413 : vector<8x32xf32>
    %cst_114 = arith.constant 1.000000e+00 : f32
    %415 = vector.broadcast %cst_114 : f32 to vector<8x32xf32>
    %416 = arith.addf %415, %414 : vector<8x32xf32>
    %417 = arith.divf %415, %416 : vector<8x32xf32>
    %418 = vector.extract_strided_slice %380 {offsets = [0, 32], sizes = [8, 32], strides = [1, 1]} : vector<8x96xf32> to vector<8x32xf32>
    %419 = vector.extract_strided_slice %409 {offsets = [0, 32], sizes = [8, 32], strides = [1, 1]} : vector<8x96xf32> to vector<8x32xf32>
    %420 = arith.addf %418, %419 : vector<8x32xf32>
    %421 = arith.negf %420 : vector<8x32xf32>
    %422 = math.exp %421 : vector<8x32xf32>
    %cst_115 = arith.constant 1.000000e+00 : f32
    %423 = vector.broadcast %cst_115 : f32 to vector<8x32xf32>
    %424 = arith.addf %423, %422 : vector<8x32xf32>
    %425 = arith.divf %423, %424 : vector<8x32xf32>
    %426 = vector.extract_strided_slice %380 {offsets = [0, 64], sizes = [8, 32], strides = [1, 1]} : vector<8x96xf32> to vector<8x32xf32>
    %427 = vector.extract_strided_slice %409 {offsets = [0, 64], sizes = [8, 32], strides = [1, 1]} : vector<8x96xf32> to vector<8x32xf32>
    %428 = arith.addf %427, %14 : vector<8x32xf32>
    %429 = arith.mulf %417, %428 : vector<8x32xf32>
    %430 = arith.addf %426, %429 : vector<8x32xf32>
    %431 = math.tanh %430 : vector<8x32xf32>
    %cst_116 = arith.constant 1.000000e+00 : f32
    %432 = vector.broadcast %cst_116 : f32 to vector<8x32xf32>
    %433 = arith.subf %432, %425 : vector<8x32xf32>
    %434 = arith.mulf %433, %431 : vector<8x32xf32>
    %435 = arith.mulf %425, %371 : vector<8x32xf32>
    %436 = arith.addf %434, %435 : vector<8x32xf32>
    %437 = arith.index_cast %c4_i32 : i32 to index
    %c0_117 = arith.constant 0 : index
    %c0_118 = arith.constant 0 : index
    %438 = vector.load %arg1[%437, %c0_117, %c0_118] : memref<8x8x32xf32, #tpu.memory_space<vmem>>, vector<1x8x32xf32>
    %439 = vector.shape_cast %438 : vector<1x8x32xf32> to vector<8x32xf32>
    %440 = arith.index_cast %372 : i32 to index
    %c0_119 = arith.constant 0 : index
    %c0_120 = arith.constant 0 : index
    %441 = vector.load %arg1[%440, %c0_119, %c0_120] : memref<8x8x32xf32, #tpu.memory_space<vmem>>, vector<1x8x32xf32>
    %442 = vector.shape_cast %441 : vector<1x8x32xf32> to vector<8x32xf32>
    %443 = arith.mulf %408, %439 : vector<8x32xf32>
    %444 = arith.mulf %436, %442 : vector<8x32xf32>
    %445 = arith.index_cast %c4_i32 : i32 to index
    %c0_121 = arith.constant 0 : index
    %c0_122 = arith.constant 0 : index
    %446 = vector.load %arg11[%445, %c0_121, %c0_122] : memref<8x8x64xf32, #tpu.memory_space<vmem>>, vector<1x8x32xf32>
    %447 = vector.shape_cast %446 : vector<1x8x32xf32> to vector<8x32xf32>
    %448 = vector.shape_cast %443 : vector<8x32xf32> to vector<1x8x32xf32>
    tpu.vector_store %arg11[%445, %c0_121, %c0_122], %448 {strides = array<i32>} : memref<8x8x64xf32, #tpu.memory_space<vmem>>, vector<1x8x32xf32>,
    %449 = arith.index_cast %372 : i32 to index
    %c0_123 = arith.constant 0 : index
    %c32_124 = arith.constant 32 : index
    %450 = vector.load %arg11[%449, %c0_123, %c32_124] : memref<8x8x64xf32, #tpu.memory_space<vmem>>, vector<1x8x32xf32>
    %451 = vector.shape_cast %450 : vector<1x8x32xf32> to vector<8x32xf32>
    %452 = vector.shape_cast %444 : vector<8x32xf32> to vector<1x8x32xf32>
    tpu.vector_store %arg11[%449, %c0_123, %c32_124], %452 {strides = array<i32>} : memref<8x8x64xf32, #tpu.memory_space<vmem>>, vector<1x8x32xf32>,
    %cst_125 = arith.constant 1.000000e+00 : f32
    %453 = vector.broadcast %cst_125 : f32 to vector<8x32xf32>
    %454 = arith.subf %453, %439 : vector<8x32xf32>
    %455 = arith.mulf %367, %454 : vector<8x32xf32>
    %456 = arith.addf %443, %455 : vector<8x32xf32>
    %cst_126 = arith.constant 1.000000e+00 : f32
    %457 = vector.broadcast %cst_126 : f32 to vector<8x32xf32>
    %458 = arith.subf %457, %442 : vector<8x32xf32>
    %459 = arith.mulf %371, %458 : vector<8x32xf32>
    %460 = arith.addf %444, %459 : vector<8x32xf32>
    %c5_i32 = arith.constant 5 : i32
    %c7_i32_127 = arith.constant 7 : i32
    %461 = arith.subi %c7_i32_127, %c5_i32 : i32
    %c8_i32_128 = arith.constant 8 : i32
    %462 = arith.muli %c5_i32, %c8_i32_128 : i32
    %463 = tpu.assume_multiple %462, 8 : i32
    %c8_i32_129 = arith.constant 8 : i32
    %464 = arith.muli %461, %c8_i32_129 : i32
    %465 = tpu.assume_multiple %464, 8 : i32
    %466 = arith.index_cast %463 : i32 to index
    %c0_130 = arith.constant 0 : index
    %467 = vector.load %arg13[%466, %c0_130] : memref<64x256xf32, #tpu.memory_space<vmem>>, vector<8x96xf32>
    %468 = arith.index_cast %465 : i32 to index
    %c128_131 = arith.constant 128 : index
    %469 = vector.load %arg13[%468, %c128_131] : memref<64x256xf32, #tpu.memory_space<vmem>>, vector<8x96xf32>
    %cst_132 = arith.constant dense<0.000000e+00> : vector<8x96xf32>
    %470 = tpu.matmul %456, %7, %cst_132 {dimension_numbers = #tpu.dot_dimension_numbers<[1], [0], [0], [1], [0, 0, 1, 1], [], []>} : vector<8x32xf32>, vector<32x96xf32>, vector<8x96xf32> -> vector<8x96xf32>
    %471 = vector.extract_strided_slice %467 {offsets = [0, 0], sizes = [8, 32], strides = [1, 1]} : vector<8x96xf32> to vector<8x32xf32>
    %472 = vector.extract_strided_slice %470 {offsets = [0, 0], sizes = [8, 32], strides = [1, 1]} : vector<8x96xf32> to vector<8x32xf32>
    %473 = arith.addf %471, %472 : vector<8x32xf32>
    %474 = arith.negf %473 : vector<8x32xf32>
    %475 = math.exp %474 : vector<8x32xf32>
    %cst_133 = arith.constant 1.000000e+00 : f32
    %476 = vector.broadcast %cst_133 : f32 to vector<8x32xf32>
    %477 = arith.addf %476, %475 : vector<8x32xf32>
    %478 = arith.divf %476, %477 : vector<8x32xf32>
    %479 = vector.extract_strided_slice %467 {offsets = [0, 32], sizes = [8, 32], strides = [1, 1]} : vector<8x96xf32> to vector<8x32xf32>
    %480 = vector.extract_strided_slice %470 {offsets = [0, 32], sizes = [8, 32], strides = [1, 1]} : vector<8x96xf32> to vector<8x32xf32>
    %481 = arith.addf %479, %480 : vector<8x32xf32>
    %482 = arith.negf %481 : vector<8x32xf32>
    %483 = math.exp %482 : vector<8x32xf32>
    %cst_134 = arith.constant 1.000000e+00 : f32
    %484 = vector.broadcast %cst_134 : f32 to vector<8x32xf32>
    %485 = arith.addf %484, %483 : vector<8x32xf32>
    %486 = arith.divf %484, %485 : vector<8x32xf32>
    %487 = vector.extract_strided_slice %467 {offsets = [0, 64], sizes = [8, 32], strides = [1, 1]} : vector<8x96xf32> to vector<8x32xf32>
    %488 = vector.extract_strided_slice %470 {offsets = [0, 64], sizes = [8, 32], strides = [1, 1]} : vector<8x96xf32> to vector<8x32xf32>
    %489 = arith.addf %488, %11 : vector<8x32xf32>
    %490 = arith.mulf %478, %489 : vector<8x32xf32>
    %491 = arith.addf %487, %490 : vector<8x32xf32>
    %492 = math.tanh %491 : vector<8x32xf32>
    %cst_135 = arith.constant 1.000000e+00 : f32
    %493 = vector.broadcast %cst_135 : f32 to vector<8x32xf32>
    %494 = arith.subf %493, %486 : vector<8x32xf32>
    %495 = arith.mulf %494, %492 : vector<8x32xf32>
    %496 = arith.mulf %486, %456 : vector<8x32xf32>
    %497 = arith.addf %495, %496 : vector<8x32xf32>
    %cst_136 = arith.constant dense<0.000000e+00> : vector<8x96xf32>
    %498 = tpu.matmul %460, %8, %cst_136 {dimension_numbers = #tpu.dot_dimension_numbers<[1], [0], [0], [1], [0, 0, 1, 1], [], []>} : vector<8x32xf32>, vector<32x96xf32>, vector<8x96xf32> -> vector<8x96xf32>
    %499 = vector.extract_strided_slice %469 {offsets = [0, 0], sizes = [8, 32], strides = [1, 1]} : vector<8x96xf32> to vector<8x32xf32>
    %500 = vector.extract_strided_slice %498 {offsets = [0, 0], sizes = [8, 32], strides = [1, 1]} : vector<8x96xf32> to vector<8x32xf32>
    %501 = arith.addf %499, %500 : vector<8x32xf32>
    %502 = arith.negf %501 : vector<8x32xf32>
    %503 = math.exp %502 : vector<8x32xf32>
    %cst_137 = arith.constant 1.000000e+00 : f32
    %504 = vector.broadcast %cst_137 : f32 to vector<8x32xf32>
    %505 = arith.addf %504, %503 : vector<8x32xf32>
    %506 = arith.divf %504, %505 : vector<8x32xf32>
    %507 = vector.extract_strided_slice %469 {offsets = [0, 32], sizes = [8, 32], strides = [1, 1]} : vector<8x96xf32> to vector<8x32xf32>
    %508 = vector.extract_strided_slice %498 {offsets = [0, 32], sizes = [8, 32], strides = [1, 1]} : vector<8x96xf32> to vector<8x32xf32>
    %509 = arith.addf %507, %508 : vector<8x32xf32>
    %510 = arith.negf %509 : vector<8x32xf32>
    %511 = math.exp %510 : vector<8x32xf32>
    %cst_138 = arith.constant 1.000000e+00 : f32
    %512 = vector.broadcast %cst_138 : f32 to vector<8x32xf32>
    %513 = arith.addf %512, %511 : vector<8x32xf32>
    %514 = arith.divf %512, %513 : vector<8x32xf32>
    %515 = vector.extract_strided_slice %469 {offsets = [0, 64], sizes = [8, 32], strides = [1, 1]} : vector<8x96xf32> to vector<8x32xf32>
    %516 = vector.extract_strided_slice %498 {offsets = [0, 64], sizes = [8, 32], strides = [1, 1]} : vector<8x96xf32> to vector<8x32xf32>
    %517 = arith.addf %516, %14 : vector<8x32xf32>
    %518 = arith.mulf %506, %517 : vector<8x32xf32>
    %519 = arith.addf %515, %518 : vector<8x32xf32>
    %520 = math.tanh %519 : vector<8x32xf32>
    %cst_139 = arith.constant 1.000000e+00 : f32
    %521 = vector.broadcast %cst_139 : f32 to vector<8x32xf32>
    %522 = arith.subf %521, %514 : vector<8x32xf32>
    %523 = arith.mulf %522, %520 : vector<8x32xf32>
    %524 = arith.mulf %514, %460 : vector<8x32xf32>
    %525 = arith.addf %523, %524 : vector<8x32xf32>
    %526 = arith.index_cast %c5_i32 : i32 to index
    %c0_140 = arith.constant 0 : index
    %c0_141 = arith.constant 0 : index
    %527 = vector.load %arg1[%526, %c0_140, %c0_141] : memref<8x8x32xf32, #tpu.memory_space<vmem>>, vector<1x8x32xf32>
    %528 = vector.shape_cast %527 : vector<1x8x32xf32> to vector<8x32xf32>
    %529 = arith.index_cast %461 : i32 to index
    %c0_142 = arith.constant 0 : index
    %c0_143 = arith.constant 0 : index
    %530 = vector.load %arg1[%529, %c0_142, %c0_143] : memref<8x8x32xf32, #tpu.memory_space<vmem>>, vector<1x8x32xf32>
    %531 = vector.shape_cast %530 : vector<1x8x32xf32> to vector<8x32xf32>
    %532 = arith.mulf %497, %528 : vector<8x32xf32>
    %533 = arith.mulf %525, %531 : vector<8x32xf32>
    %534 = arith.index_cast %c5_i32 : i32 to index
    %c0_144 = arith.constant 0 : index
    %c0_145 = arith.constant 0 : index
    %535 = vector.load %arg11[%534, %c0_144, %c0_145] : memref<8x8x64xf32, #tpu.memory_space<vmem>>, vector<1x8x32xf32>
    %536 = vector.shape_cast %535 : vector<1x8x32xf32> to vector<8x32xf32>
    %537 = vector.shape_cast %532 : vector<8x32xf32> to vector<1x8x32xf32>
    tpu.vector_store %arg11[%534, %c0_144, %c0_145], %537 {strides = array<i32>} : memref<8x8x64xf32, #tpu.memory_space<vmem>>, vector<1x8x32xf32>,
    %538 = arith.index_cast %461 : i32 to index
    %c0_146 = arith.constant 0 : index
    %c32_147 = arith.constant 32 : index
    %539 = vector.load %arg11[%538, %c0_146, %c32_147] : memref<8x8x64xf32, #tpu.memory_space<vmem>>, vector<1x8x32xf32>
    %540 = vector.shape_cast %539 : vector<1x8x32xf32> to vector<8x32xf32>
    %541 = vector.shape_cast %533 : vector<8x32xf32> to vector<1x8x32xf32>
    tpu.vector_store %arg11[%538, %c0_146, %c32_147], %541 {strides = array<i32>} : memref<8x8x64xf32, #tpu.memory_space<vmem>>, vector<1x8x32xf32>,
    %cst_148 = arith.constant 1.000000e+00 : f32
    %542 = vector.broadcast %cst_148 : f32 to vector<8x32xf32>
    %543 = arith.subf %542, %528 : vector<8x32xf32>
    %544 = arith.mulf %456, %543 : vector<8x32xf32>
    %545 = arith.addf %532, %544 : vector<8x32xf32>
    %cst_149 = arith.constant 1.000000e+00 : f32
    %546 = vector.broadcast %cst_149 : f32 to vector<8x32xf32>
    %547 = arith.subf %546, %531 : vector<8x32xf32>
    %548 = arith.mulf %460, %547 : vector<8x32xf32>
    %549 = arith.addf %533, %548 : vector<8x32xf32>
    %c6_i32 = arith.constant 6 : i32
    %c7_i32_150 = arith.constant 7 : i32
    %550 = arith.subi %c7_i32_150, %c6_i32 : i32
    %c8_i32_151 = arith.constant 8 : i32
    %551 = arith.muli %c6_i32, %c8_i32_151 : i32
    %552 = tpu.assume_multiple %551, 8 : i32
    %c8_i32_152 = arith.constant 8 : i32
    %553 = arith.muli %550, %c8_i32_152 : i32
    %554 = tpu.assume_multiple %553, 8 : i32
    %555 = arith.index_cast %552 : i32 to index
    %c0_153 = arith.constant 0 : index
    %556 = vector.load %arg13[%555, %c0_153] : memref<64x256xf32, #tpu.memory_space<vmem>>, vector<8x96xf32>
    %557 = arith.index_cast %554 : i32 to index
    %c128_154 = arith.constant 128 : index
    %558 = vector.load %arg13[%557, %c128_154] : memref<64x256xf32, #tpu.memory_space<vmem>>, vector<8x96xf32>
    %cst_155 = arith.constant dense<0.000000e+00> : vector<8x96xf32>
    %559 = tpu.matmul %545, %7, %cst_155 {dimension_numbers = #tpu.dot_dimension_numbers<[1], [0], [0], [1], [0, 0, 1, 1], [], []>} : vector<8x32xf32>, vector<32x96xf32>, vector<8x96xf32> -> vector<8x96xf32>
    %560 = vector.extract_strided_slice %556 {offsets = [0, 0], sizes = [8, 32], strides = [1, 1]} : vector<8x96xf32> to vector<8x32xf32>
    %561 = vector.extract_strided_slice %559 {offsets = [0, 0], sizes = [8, 32], strides = [1, 1]} : vector<8x96xf32> to vector<8x32xf32>
    %562 = arith.addf %560, %561 : vector<8x32xf32>
    %563 = arith.negf %562 : vector<8x32xf32>
    %564 = math.exp %563 : vector<8x32xf32>
    %cst_156 = arith.constant 1.000000e+00 : f32
    %565 = vector.broadcast %cst_156 : f32 to vector<8x32xf32>
    %566 = arith.addf %565, %564 : vector<8x32xf32>
    %567 = arith.divf %565, %566 : vector<8x32xf32>
    %568 = vector.extract_strided_slice %556 {offsets = [0, 32], sizes = [8, 32], strides = [1, 1]} : vector<8x96xf32> to vector<8x32xf32>
    %569 = vector.extract_strided_slice %559 {offsets = [0, 32], sizes = [8, 32], strides = [1, 1]} : vector<8x96xf32> to vector<8x32xf32>
    %570 = arith.addf %568, %569 : vector<8x32xf32>
    %571 = arith.negf %570 : vector<8x32xf32>
    %572 = math.exp %571 : vector<8x32xf32>
    %cst_157 = arith.constant 1.000000e+00 : f32
    %573 = vector.broadcast %cst_157 : f32 to vector<8x32xf32>
    %574 = arith.addf %573, %572 : vector<8x32xf32>
    %575 = arith.divf %573, %574 : vector<8x32xf32>
    %576 = vector.extract_strided_slice %556 {offsets = [0, 64], sizes = [8, 32], strides = [1, 1]} : vector<8x96xf32> to vector<8x32xf32>
    %577 = vector.extract_strided_slice %559 {offsets = [0, 64], sizes = [8, 32], strides = [1, 1]} : vector<8x96xf32> to vector<8x32xf32>
    %578 = arith.addf %577, %11 : vector<8x32xf32>
    %579 = arith.mulf %567, %578 : vector<8x32xf32>
    %580 = arith.addf %576, %579 : vector<8x32xf32>
    %581 = math.tanh %580 : vector<8x32xf32>
    %cst_158 = arith.constant 1.000000e+00 : f32
    %582 = vector.broadcast %cst_158 : f32 to vector<8x32xf32>
    %583 = arith.subf %582, %575 : vector<8x32xf32>
    %584 = arith.mulf %583, %581 : vector<8x32xf32>
    %585 = arith.mulf %575, %545 : vector<8x32xf32>
    %586 = arith.addf %584, %585 : vector<8x32xf32>
    %cst_159 = arith.constant dense<0.000000e+00> : vector<8x96xf32>
    %587 = tpu.matmul %549, %8, %cst_159 {dimension_numbers = #tpu.dot_dimension_numbers<[1], [0], [0], [1], [0, 0, 1, 1], [], []>} : vector<8x32xf32>, vector<32x96xf32>, vector<8x96xf32> -> vector<8x96xf32>
    %588 = vector.extract_strided_slice %558 {offsets = [0, 0], sizes = [8, 32], strides = [1, 1]} : vector<8x96xf32> to vector<8x32xf32>
    %589 = vector.extract_strided_slice %587 {offsets = [0, 0], sizes = [8, 32], strides = [1, 1]} : vector<8x96xf32> to vector<8x32xf32>
    %590 = arith.addf %588, %589 : vector<8x32xf32>
    %591 = arith.negf %590 : vector<8x32xf32>
    %592 = math.exp %591 : vector<8x32xf32>
    %cst_160 = arith.constant 1.000000e+00 : f32
    %593 = vector.broadcast %cst_160 : f32 to vector<8x32xf32>
    %594 = arith.addf %593, %592 : vector<8x32xf32>
    %595 = arith.divf %593, %594 : vector<8x32xf32>
    %596 = vector.extract_strided_slice %558 {offsets = [0, 32], sizes = [8, 32], strides = [1, 1]} : vector<8x96xf32> to vector<8x32xf32>
    %597 = vector.extract_strided_slice %587 {offsets = [0, 32], sizes = [8, 32], strides = [1, 1]} : vector<8x96xf32> to vector<8x32xf32>
    %598 = arith.addf %596, %597 : vector<8x32xf32>
    %599 = arith.negf %598 : vector<8x32xf32>
    %600 = math.exp %599 : vector<8x32xf32>
    %cst_161 = arith.constant 1.000000e+00 : f32
    %601 = vector.broadcast %cst_161 : f32 to vector<8x32xf32>
    %602 = arith.addf %601, %600 : vector<8x32xf32>
    %603 = arith.divf %601, %602 : vector<8x32xf32>
    %604 = vector.extract_strided_slice %558 {offsets = [0, 64], sizes = [8, 32], strides = [1, 1]} : vector<8x96xf32> to vector<8x32xf32>
    %605 = vector.extract_strided_slice %587 {offsets = [0, 64], sizes = [8, 32], strides = [1, 1]} : vector<8x96xf32> to vector<8x32xf32>
    %606 = arith.addf %605, %14 : vector<8x32xf32>
    %607 = arith.mulf %595, %606 : vector<8x32xf32>
    %608 = arith.addf %604, %607 : vector<8x32xf32>
    %609 = math.tanh %608 : vector<8x32xf32>
    %cst_162 = arith.constant 1.000000e+00 : f32
    %610 = vector.broadcast %cst_162 : f32 to vector<8x32xf32>
    %611 = arith.subf %610, %603 : vector<8x32xf32>
    %612 = arith.mulf %611, %609 : vector<8x32xf32>
    %613 = arith.mulf %603, %549 : vector<8x32xf32>
    %614 = arith.addf %612, %613 : vector<8x32xf32>
    %615 = arith.index_cast %c6_i32 : i32 to index
    %c0_163 = arith.constant 0 : index
    %c0_164 = arith.constant 0 : index
    %616 = vector.load %arg1[%615, %c0_163, %c0_164] : memref<8x8x32xf32, #tpu.memory_space<vmem>>, vector<1x8x32xf32>
    %617 = vector.shape_cast %616 : vector<1x8x32xf32> to vector<8x32xf32>
    %618 = arith.index_cast %550 : i32 to index
    %c0_165 = arith.constant 0 : index
    %c0_166 = arith.constant 0 : index
    %619 = vector.load %arg1[%618, %c0_165, %c0_166] : memref<8x8x32xf32, #tpu.memory_space<vmem>>, vector<1x8x32xf32>
    %620 = vector.shape_cast %619 : vector<1x8x32xf32> to vector<8x32xf32>
    %621 = arith.mulf %586, %617 : vector<8x32xf32>
    %622 = arith.mulf %614, %620 : vector<8x32xf32>
    %623 = arith.index_cast %c6_i32 : i32 to index
    %c0_167 = arith.constant 0 : index
    %c0_168 = arith.constant 0 : index
    %624 = vector.load %arg11[%623, %c0_167, %c0_168] : memref<8x8x64xf32, #tpu.memory_space<vmem>>, vector<1x8x32xf32>
    %625 = vector.shape_cast %624 : vector<1x8x32xf32> to vector<8x32xf32>
    %626 = vector.shape_cast %621 : vector<8x32xf32> to vector<1x8x32xf32>
    tpu.vector_store %arg11[%623, %c0_167, %c0_168], %626 {strides = array<i32>} : memref<8x8x64xf32, #tpu.memory_space<vmem>>, vector<1x8x32xf32>,
    %627 = arith.index_cast %550 : i32 to index
    %c0_169 = arith.constant 0 : index
    %c32_170 = arith.constant 32 : index
    %628 = vector.load %arg11[%627, %c0_169, %c32_170] : memref<8x8x64xf32, #tpu.memory_space<vmem>>, vector<1x8x32xf32>
    %629 = vector.shape_cast %628 : vector<1x8x32xf32> to vector<8x32xf32>
    %630 = vector.shape_cast %622 : vector<8x32xf32> to vector<1x8x32xf32>
    tpu.vector_store %arg11[%627, %c0_169, %c32_170], %630 {strides = array<i32>} : memref<8x8x64xf32, #tpu.memory_space<vmem>>, vector<1x8x32xf32>,
    %cst_171 = arith.constant 1.000000e+00 : f32
    %631 = vector.broadcast %cst_171 : f32 to vector<8x32xf32>
    %632 = arith.subf %631, %617 : vector<8x32xf32>
    %633 = arith.mulf %545, %632 : vector<8x32xf32>
    %634 = arith.addf %621, %633 : vector<8x32xf32>
    %cst_172 = arith.constant 1.000000e+00 : f32
    %635 = vector.broadcast %cst_172 : f32 to vector<8x32xf32>
    %636 = arith.subf %635, %620 : vector<8x32xf32>
    %637 = arith.mulf %549, %636 : vector<8x32xf32>
    %638 = arith.addf %622, %637 : vector<8x32xf32>
    %c7_i32_173 = arith.constant 7 : i32
    %c7_i32_174 = arith.constant 7 : i32
    %639 = arith.subi %c7_i32_174, %c7_i32_173 : i32
    %c8_i32_175 = arith.constant 8 : i32
    %640 = arith.muli %c7_i32_173, %c8_i32_175 : i32
    %641 = tpu.assume_multiple %640, 8 : i32
    %c8_i32_176 = arith.constant 8 : i32
    %642 = arith.muli %639, %c8_i32_176 : i32
    %643 = tpu.assume_multiple %642, 8 : i32
    %644 = arith.index_cast %641 : i32 to index
    %c0_177 = arith.constant 0 : index
    %645 = vector.load %arg13[%644, %c0_177] : memref<64x256xf32, #tpu.memory_space<vmem>>, vector<8x96xf32>
    %646 = arith.index_cast %643 : i32 to index
    %c128_178 = arith.constant 128 : index
    %647 = vector.load %arg13[%646, %c128_178] : memref<64x256xf32, #tpu.memory_space<vmem>>, vector<8x96xf32>
    %cst_179 = arith.constant dense<0.000000e+00> : vector<8x96xf32>
    %648 = tpu.matmul %634, %7, %cst_179 {dimension_numbers = #tpu.dot_dimension_numbers<[1], [0], [0], [1], [0, 0, 1, 1], [], []>} : vector<8x32xf32>, vector<32x96xf32>, vector<8x96xf32> -> vector<8x96xf32>
    %649 = vector.extract_strided_slice %645 {offsets = [0, 0], sizes = [8, 32], strides = [1, 1]} : vector<8x96xf32> to vector<8x32xf32>
    %650 = vector.extract_strided_slice %648 {offsets = [0, 0], sizes = [8, 32], strides = [1, 1]} : vector<8x96xf32> to vector<8x32xf32>
    %651 = arith.addf %649, %650 : vector<8x32xf32>
    %652 = arith.negf %651 : vector<8x32xf32>
    %653 = math.exp %652 : vector<8x32xf32>
    %cst_180 = arith.constant 1.000000e+00 : f32
    %654 = vector.broadcast %cst_180 : f32 to vector<8x32xf32>
    %655 = arith.addf %654, %653 : vector<8x32xf32>
    %656 = arith.divf %654, %655 : vector<8x32xf32>
    %657 = vector.extract_strided_slice %645 {offsets = [0, 32], sizes = [8, 32], strides = [1, 1]} : vector<8x96xf32> to vector<8x32xf32>
    %658 = vector.extract_strided_slice %648 {offsets = [0, 32], sizes = [8, 32], strides = [1, 1]} : vector<8x96xf32> to vector<8x32xf32>
    %659 = arith.addf %657, %658 : vector<8x32xf32>
    %660 = arith.negf %659 : vector<8x32xf32>
    %661 = math.exp %660 : vector<8x32xf32>
    %cst_181 = arith.constant 1.000000e+00 : f32
    %662 = vector.broadcast %cst_181 : f32 to vector<8x32xf32>
    %663 = arith.addf %662, %661 : vector<8x32xf32>
    %664 = arith.divf %662, %663 : vector<8x32xf32>
    %665 = vector.extract_strided_slice %645 {offsets = [0, 64], sizes = [8, 32], strides = [1, 1]} : vector<8x96xf32> to vector<8x32xf32>
    %666 = vector.extract_strided_slice %648 {offsets = [0, 64], sizes = [8, 32], strides = [1, 1]} : vector<8x96xf32> to vector<8x32xf32>
    %667 = arith.addf %666, %11 : vector<8x32xf32>
    %668 = arith.mulf %656, %667 : vector<8x32xf32>
    %669 = arith.addf %665, %668 : vector<8x32xf32>
    %670 = math.tanh %669 : vector<8x32xf32>
    %cst_182 = arith.constant 1.000000e+00 : f32
    %671 = vector.broadcast %cst_182 : f32 to vector<8x32xf32>
    %672 = arith.subf %671, %664 : vector<8x32xf32>
    %673 = arith.mulf %672, %670 : vector<8x32xf32>
    %674 = arith.mulf %664, %634 : vector<8x32xf32>
    %675 = arith.addf %673, %674 : vector<8x32xf32>
    %cst_183 = arith.constant dense<0.000000e+00> : vector<8x96xf32>
    %676 = tpu.matmul %638, %8, %cst_183 {dimension_numbers = #tpu.dot_dimension_numbers<[1], [0], [0], [1], [0, 0, 1, 1], [], []>} : vector<8x32xf32>, vector<32x96xf32>, vector<8x96xf32> -> vector<8x96xf32>
    %677 = vector.extract_strided_slice %647 {offsets = [0, 0], sizes = [8, 32], strides = [1, 1]} : vector<8x96xf32> to vector<8x32xf32>
    %678 = vector.extract_strided_slice %676 {offsets = [0, 0], sizes = [8, 32], strides = [1, 1]} : vector<8x96xf32> to vector<8x32xf32>
    %679 = arith.addf %677, %678 : vector<8x32xf32>
    %680 = arith.negf %679 : vector<8x32xf32>
    %681 = math.exp %680 : vector<8x32xf32>
    %cst_184 = arith.constant 1.000000e+00 : f32
    %682 = vector.broadcast %cst_184 : f32 to vector<8x32xf32>
    %683 = arith.addf %682, %681 : vector<8x32xf32>
    %684 = arith.divf %682, %683 : vector<8x32xf32>
    %685 = vector.extract_strided_slice %647 {offsets = [0, 32], sizes = [8, 32], strides = [1, 1]} : vector<8x96xf32> to vector<8x32xf32>
    %686 = vector.extract_strided_slice %676 {offsets = [0, 32], sizes = [8, 32], strides = [1, 1]} : vector<8x96xf32> to vector<8x32xf32>
    %687 = arith.addf %685, %686 : vector<8x32xf32>
    %688 = arith.negf %687 : vector<8x32xf32>
    %689 = math.exp %688 : vector<8x32xf32>
    %cst_185 = arith.constant 1.000000e+00 : f32
    %690 = vector.broadcast %cst_185 : f32 to vector<8x32xf32>
    %691 = arith.addf %690, %689 : vector<8x32xf32>
    %692 = arith.divf %690, %691 : vector<8x32xf32>
    %693 = vector.extract_strided_slice %647 {offsets = [0, 64], sizes = [8, 32], strides = [1, 1]} : vector<8x96xf32> to vector<8x32xf32>
    %694 = vector.extract_strided_slice %676 {offsets = [0, 64], sizes = [8, 32], strides = [1, 1]} : vector<8x96xf32> to vector<8x32xf32>
    %695 = arith.addf %694, %14 : vector<8x32xf32>
    %696 = arith.mulf %684, %695 : vector<8x32xf32>
    %697 = arith.addf %693, %696 : vector<8x32xf32>
    %698 = math.tanh %697 : vector<8x32xf32>
    %cst_186 = arith.constant 1.000000e+00 : f32
    %699 = vector.broadcast %cst_186 : f32 to vector<8x32xf32>
    %700 = arith.subf %699, %692 : vector<8x32xf32>
    %701 = arith.mulf %700, %698 : vector<8x32xf32>
    %702 = arith.mulf %692, %638 : vector<8x32xf32>
    %703 = arith.addf %701, %702 : vector<8x32xf32>
    %704 = arith.index_cast %c7_i32_173 : i32 to index
    %c0_187 = arith.constant 0 : index
    %c0_188 = arith.constant 0 : index
    %705 = vector.load %arg1[%704, %c0_187, %c0_188] : memref<8x8x32xf32, #tpu.memory_space<vmem>>, vector<1x8x32xf32>
    %706 = vector.shape_cast %705 : vector<1x8x32xf32> to vector<8x32xf32>
    %707 = arith.index_cast %639 : i32 to index
    %c0_189 = arith.constant 0 : index
    %c0_190 = arith.constant 0 : index
    %708 = vector.load %arg1[%707, %c0_189, %c0_190] : memref<8x8x32xf32, #tpu.memory_space<vmem>>, vector<1x8x32xf32>
    %709 = vector.shape_cast %708 : vector<1x8x32xf32> to vector<8x32xf32>
    %710 = arith.mulf %675, %706 : vector<8x32xf32>
    %711 = arith.mulf %703, %709 : vector<8x32xf32>
    %712 = arith.index_cast %c7_i32_173 : i32 to index
    %c0_191 = arith.constant 0 : index
    %c0_192 = arith.constant 0 : index
    %713 = vector.load %arg11[%712, %c0_191, %c0_192] : memref<8x8x64xf32, #tpu.memory_space<vmem>>, vector<1x8x32xf32>
    %714 = vector.shape_cast %713 : vector<1x8x32xf32> to vector<8x32xf32>
    %715 = vector.shape_cast %710 : vector<8x32xf32> to vector<1x8x32xf32>
    tpu.vector_store %arg11[%712, %c0_191, %c0_192], %715 {strides = array<i32>} : memref<8x8x64xf32, #tpu.memory_space<vmem>>, vector<1x8x32xf32>,
    %716 = arith.index_cast %639 : i32 to index
    %c0_193 = arith.constant 0 : index
    %c32_194 = arith.constant 32 : index
    %717 = vector.load %arg11[%716, %c0_193, %c32_194] : memref<8x8x64xf32, #tpu.memory_space<vmem>>, vector<1x8x32xf32>
    %718 = vector.shape_cast %717 : vector<1x8x32xf32> to vector<8x32xf32>
    %719 = vector.shape_cast %711 : vector<8x32xf32> to vector<1x8x32xf32>
    tpu.vector_store %arg11[%716, %c0_193, %c32_194], %719 {strides = array<i32>} : memref<8x8x64xf32, #tpu.memory_space<vmem>>, vector<1x8x32xf32>,
    %cst_195 = arith.constant 1.000000e+00 : f32
    %720 = vector.broadcast %cst_195 : f32 to vector<8x32xf32>
    %721 = arith.subf %720, %706 : vector<8x32xf32>
    %722 = arith.mulf %634, %721 : vector<8x32xf32>
    %723 = arith.addf %710, %722 : vector<8x32xf32>
    %cst_196 = arith.constant 1.000000e+00 : f32
    %724 = vector.broadcast %cst_196 : f32 to vector<8x32xf32>
    %725 = arith.subf %724, %709 : vector<8x32xf32>
    %726 = arith.mulf %638, %725 : vector<8x32xf32>
    %727 = arith.addf %711, %726 : vector<8x32xf32>
    %c8_i32_197 = arith.constant 8 : i32
    %c0_198 = arith.constant 0 : index
    %c0_199 = arith.constant 0 : index
    %728 = vector.load %arg8[%c0_198, %c0_199] : memref<32x32xf32, #tpu.memory_space<vmem>>, vector<32x32xf32>
    %cst_200 = arith.constant dense<0.000000e+00> : vector<8x32xf32>
    %729 = tpu.matmul %723, %728, %cst_200 {dimension_numbers = #tpu.dot_dimension_numbers<[1], [0], [0], [1], [0, 0, 1, 1], [], []>} : vector<8x32xf32>, vector<32x32xf32>, vector<8x32xf32> -> vector<8x32xf32>
    %c0_201 = arith.constant 0 : index
    %c0_202 = arith.constant 0 : index
    %730 = vector.load %arg9[%c0_201, %c0_202] : memref<32x32xf32, #tpu.memory_space<vmem>>, vector<32x32xf32>
    %cst_203 = arith.constant dense<0.000000e+00> : vector<8x32xf32>
    %731 = tpu.matmul %727, %730, %cst_203 {dimension_numbers = #tpu.dot_dimension_numbers<[1], [0], [0], [1], [0, 0, 1, 1], [], []>} : vector<8x32xf32>, vector<32x32xf32>, vector<8x32xf32> -> vector<8x32xf32>
    %732 = arith.addf %729, %731 : vector<8x32xf32>
    %c0_204 = arith.constant 0 : index
    %c0_205 = arith.constant 0 : index
    %733 = vector.load %arg10[%c0_204, %c0_205] : memref<1x32xf32, #tpu.memory_space<vmem>>, vector<1x32xf32>
    %734 = vector.broadcast %733 : vector<1x32xf32> to vector<8x32xf32>
    %735 = arith.addf %732, %734 : vector<8x32xf32>
    %736 = math.tanh %735 : vector<8x32xf32>
    %c0_206 = arith.constant 0 : index
    %c0_207 = arith.constant 0 : index
    %737 = vector.load %arg12[%c0_206, %c0_207] : memref<8x32xf32, #tpu.memory_space<vmem>>, vector<8x32xf32>
    tpu.vector_store %arg12[%c0_206, %c0_207], %736 {strides = array<i32>} : memref<8x32xf32, #tpu.memory_space<vmem>>, vector<8x32xf32>,
    return
  }
}

</mosaic_0001>

<llo_original>
// kernel: tpu_custom_call.1
$region0: #{tpu_custom_call.1}
  #allocation0 [shape = 'u32[]', space=smem, size = 0x4, offset = 0x4, fixed_abs, tag = 'smem constant byte address 0x4 - core index']
  #allocation1 [shape = 'u32[72,128]{1,0:T(1,128)}', space=vmem, size = 0x9000, scoped, tag = 'internal scratch']
  #allocation2 [shape = 'f32[64,256]{1,0:T(8,128)}', space=vmem, size = 0x10000, scoped, tag = 'scratch operand']
  %s0 = inlined_call_operand.vmem [shape: f32[64,32], index: 0, kind: input, shape index: {}]
  %s1 = inlined_call_operand.vmem [shape: f32[8,8,32], index: 1, kind: input, shape index: {}]
  %s2 = inlined_call_operand.hbm [shape: f32[32,256], index: 2, kind: input, shape index: {}]
  %s3 = inlined_call_operand.hbm [shape: f32[1,256], index: 3, kind: input, shape index: {}]
  %s4 = inlined_call_operand.vmem [shape: f32[32,96], index: 4, kind: input, shape index: {}]
  %s5 = inlined_call_operand.hbm [shape: f32[32,96], index: 5, kind: input, shape index: {}]
  %s6 = inlined_call_operand.vmem [shape: f32[1,32], index: 6, kind: input, shape index: {}]
  %s7 = inlined_call_operand.vmem [shape: f32[1,32], index: 7, kind: input, shape index: {}]
  %s8 = inlined_call_operand.hbm [shape: f32[32,32], index: 8, kind: input, shape index: {}]
  %s9 = inlined_call_operand.hbm [shape: f32[32,32], index: 9, kind: input, shape index: {}]
  %s10 = inlined_call_operand.vmem [shape: f32[1,32], index: 10, kind: input, shape index: {}]
  %s11 = inlined_call_operand.hbm [shape: f32[8,8,64], index: 11, kind: output, shape index: {0}]
  %s12 = inlined_call_operand.hbm [shape: f32[8,32], index: 12, kind: output, shape index: {1}]
  %13 = xla_tuple %s11, %s12
  %s14 = sld [smem:[#allocation0]]
  $region82: #{tpu_custom_call.1} parent=0
    _
  %s16 = ssub.s32 1, %s14
  %s17 = scalar_select 0, %s16, %s14
  $region1: #{tpu_custom_call.1} parent=0
    #allocation3 [shape = 'u8[32768]{0}', space=vmem, size = 0x8000, scoped, tag = 'input window, operand 2, single buffered']
    #allocation4 [shape = 's32[1]{0}', space=sflag, size = 0x4, scoped, tag = 'scoped memory for tpu_custom_call.1']
    #allocation5 [shape = 's32[1]{0}', space=sflag, size = 0x4, scoped, tag = 'scoped memory for tpu_custom_call.1']
    #allocation6 [shape = 'u8[1024]{0}', space=vmem, size = 0x400, scoped, tag = 'input window, operand 3, single buffered']
    #allocation7 [shape = 's32[1]{0}', space=sflag, size = 0x4, scoped, tag = 'scoped memory for tpu_custom_call.1']
    #allocation8 [shape = 'u8[16384]{0}', space=vmem, size = 0x4000, scoped, tag = 'input window, operand 5, single buffered']
    #allocation9 [shape = 'u8[16384]{0}', space=vmem, size = 0x4000, scoped, tag = 'input window, operand 8, single buffered']
    #allocation10 [shape = 's32[1]{0}', space=sflag, size = 0x4, scoped, tag = 'scoped memory for tpu_custom_call.1']
    #allocation11 [shape = 'u8[16384]{0}', space=vmem, size = 0x4000, scoped, tag = 'input window, operand 9, single buffered']
    #allocation12 [shape = 'u8[32768]{0}', space=vmem, size = 0x8000, scoped, tag = 'output window, operand 0, single buffered']
    #allocation13 [shape = 'u8[4096]{0}', space=vmem, size = 0x1000, scoped, tag = 'output window, operand 1, single buffered']
    #allocation14 [shape = 's32[1]{0}', space=sflag, size = 0x4, scoped, tag = 'scoped memory for tpu_custom_call.1']
    %18 = vsyncpa [#allocation4], 0
    %19 = vsyncpa [#allocation7], 0
    %20 = vsyncpa [#allocation10], 0
    %21 = vsyncpa [#allocation5], 0
    %22 = vsyncpa [#allocation14], 0
    // Predicated region
    $region2: #{tpu_custom_call.1} parent=1 // pred_check
      _
    $region3: #{tpu_custom_call.1} parent=1 // pred_check_branch
      %24 = sbr.rel (0) target = $region5
    $region4: #{tpu_custom_call.1} parent=1 // pred_region
      _
    $region5: #{tpu_custom_call.1} parent=1 // pred_fallthru
      _
    // Predicated region
    $region6: #{tpu_custom_call.1} parent=1 // pred_check
      _
    $region7: #{tpu_custom_call.1} parent=1 // pred_check_branch
      %26 = sbr.rel (0) target = $region9
    $region8: #{tpu_custom_call.1} parent=1 // pred_region
      _
    $region9: #{tpu_custom_call.1} parent=1 // pred_fallthru
      _
    // Predicated region
    $region10: #{tpu_custom_call.1} parent=1 // pred_check
      _
    $region11: #{tpu_custom_call.1} parent=1 // pred_check_branch
      %28 = sbr.rel (0) target = $region13
    $region12: #{tpu_custom_call.1} parent=1 // pred_region
      %30 = vsyncadd [#allocation4], 0
      %s31 = sshll.u32 %s2, 4
      %s32 = int_to_ptr.hbm [resolvable:$true] %s31
      %s33 = sshll.u32 [#allocation3], 4
      %s34 = int_to_ptr.vmem [resolvable:$true] %s33
      %39 = dma.hbm_to_vmem [thread:$0]  %s32, 1024, %s34, [#allocation4], 256, 256, 16
    $region13: #{tpu_custom_call.1} parent=1 // pred_fallthru
      _
    // Predicated region
    $region14: #{tpu_custom_call.1} parent=1 // pred_check
      _
    $region15: #{tpu_custom_call.1} parent=1 // pred_check_branch
      %41 = sbr.rel (0) target = $region17
    $region16: #{tpu_custom_call.1} parent=1 // pred_region
      %43 = vsyncadd [#allocation7], 0
      %s45 = sshll.u32 %s3, 4
      %s46 = int_to_ptr.hbm [resolvable:$true] %s45
      %s47 = sshll.u32 [#allocation6], 4
      %s48 = int_to_ptr.vmem [resolvable:$true] %s47
      %50 = dma.hbm_to_vmem [thread:$0]  %s46, 32, %s48, [#allocation7]
    $region17: #{tpu_custom_call.1} parent=1 // pred_fallthru
      _
    // Predicated region
    $region18: #{tpu_custom_call.1} parent=1 // pred_check
      _
    $region19: #{tpu_custom_call.1} parent=1 // pred_check_branch
      %52 = sbr.rel (0) target = $region21
    $region20: #{tpu_custom_call.1} parent=1 // pred_region
      _
    $region21: #{tpu_custom_call.1} parent=1 // pred_fallthru
      _
    // Predicated region
    $region22: #{tpu_custom_call.1} parent=1 // pred_check
      _
    $region23: #{tpu_custom_call.1} parent=1 // pred_check_branch
      %54 = sbr.rel (0) target = $region25
    $region24: #{tpu_custom_call.1} parent=1 // pred_region
      %56 = vsyncadd [#allocation7], 0
      %s57 = sshll.u32 %s5, 4
      %s58 = int_to_ptr.hbm [resolvable:$true] %s57
      %s59 = sshll.u32 [#allocation8], 4
      %s60 = int_to_ptr.vmem [resolvable:$true] %s59
      %65 = dma.hbm_to_vmem [thread:$0]  %s58, 512, %s60, [#allocation7], 128, 128, 8
    $region25: #{tpu_custom_call.1} parent=1 // pred_fallthru
      _
    // Predicated region
    $region26: #{tpu_custom_call.1} parent=1 // pred_check
      _
    $region27: #{tpu_custom_call.1} parent=1 // pred_check_branch
      %67 = sbr.rel (0) target = $region29
    $region28: #{tpu_custom_call.1} parent=1 // pred_region
      _
    $region29: #{tpu_custom_call.1} parent=1 // pred_fallthru
      _
    // Predicated region
    $region30: #{tpu_custom_call.1} parent=1 // pred_check
      _
    $region31: #{tpu_custom_call.1} parent=1 // pred_check_branch
      %69 = sbr.rel (0) target = $region33
    $region32: #{tpu_custom_call.1} parent=1 // pred_region
      _
    $region33: #{tpu_custom_call.1} parent=1 // pred_fallthru
      _
    // Predicated region
    $region34: #{tpu_custom_call.1} parent=1 // pred_check
      _
    $region35: #{tpu_custom_call.1} parent=1 // pred_check_branch
      %71 = sbr.rel (0) target = $region37
    $region36: #{tpu_custom_call.1} parent=1 // pred_region
      %73 = vsyncadd [#allocation10], 0
      %s74 = sshll.u32 %s8, 4
      %s75 = int_to_ptr.hbm [resolvable:$true] %s74
      %s76 = sshll.u32 [#allocation9], 4
      %s77 = int_to_ptr.vmem [resolvable:$true] %s76
      %82 = dma.hbm_to_vmem [thread:$0]  %s75, 512, %s77, [#allocation10], 128, 128, 8
    $region37: #{tpu_custom_call.1} parent=1 // pred_fallthru
      _
    // Predicated region
    $region38: #{tpu_custom_call.1} parent=1 // pred_check
      _
    $region39: #{tpu_custom_call.1} parent=1 // pred_check_branch
      %84 = sbr.rel (0) target = $region41
    $region40: #{tpu_custom_call.1} parent=1 // pred_region
      %86 = vsyncadd [#allocation10], 0
      %s87 = sshll.u32 %s9, 4
      %s88 = int_to_ptr.hbm [resolvable:$true] %s87
      %s89 = sshll.u32 [#allocation11], 4
      %s90 = int_to_ptr.vmem [resolvable:$true] %s89
      %95 = dma.hbm_to_vmem [thread:$0]  %s88, 512, %s90, [#allocation10], 128, 128, 8
    $region41: #{tpu_custom_call.1} parent=1 // pred_fallthru
      _
    // Predicated region
    $region42: #{tpu_custom_call.1} parent=1 // pred_check
      _
    $region43: #{tpu_custom_call.1} parent=1 // pred_check_branch
      %97 = sbr.rel (0) target = $region45
    $region44: #{tpu_custom_call.1} parent=1 // pred_region
      _
    $region45: #{tpu_custom_call.1} parent=1 // pred_fallthru
      _
    // Predicated region
    $region46: #{tpu_custom_call.1} parent=1 // pred_check
      _
    $region47: #{tpu_custom_call.1} parent=1 // pred_check_branch
      %99 = sbr.rel (0) target = $region49
    $region48: #{tpu_custom_call.1} parent=1 // pred_region
      %101 = dma.done [#allocation4], 1024
    $region49: #{tpu_custom_call.1} parent=1 // pred_fallthru
      _
    // Predicated region
    $region50: #{tpu_custom_call.1} parent=1 // pred_check
      _
    $region51: #{tpu_custom_call.1} parent=1 // pred_check_branch
      %103 = sbr.rel (0) target = $region53
    $region52: #{tpu_custom_call.1} parent=1 // pred_region
      %105 = dma.done [#allocation7], 32
    $region53: #{tpu_custom_call.1} parent=1 // pred_fallthru
      _
    // Predicated region
    $region54: #{tpu_custom_call.1} parent=1 // pred_check
      _
    $region55: #{tpu_custom_call.1} parent=1 // pred_check_branch
      %107 = sbr.rel (0) target = $region57
    $region56: #{tpu_custom_call.1} parent=1 // pred_region
      %109 = dma.done [#allocation7], 512
    $region57: #{tpu_custom_call.1} parent=1 // pred_fallthru
      _
    // Predicated region
    $region58: #{tpu_custom_call.1} parent=1 // pred_check
      _
    $region59: #{tpu_custom_call.1} parent=1 // pred_check_branch
      %111 = sbr.rel (0) target = $region61
    $region60: #{tpu_custom_call.1} parent=1 // pred_region
      %113 = dma.done [#allocation10], 512
    $region61: #{tpu_custom_call.1} parent=1 // pred_fallthru
      _
    // Predicated region
    $region62: #{tpu_custom_call.1} parent=1 // pred_check
      _
    $region63: #{tpu_custom_call.1} parent=1 // pred_check_branch
      %115 = sbr.rel (0) target = $region65
    $region64: #{tpu_custom_call.1} parent=1 // pred_region
      %117 = dma.done [#allocation10], 512
    $region65: #{tpu_custom_call.1} parent=1 // pred_fallthru
      _
    %v118 = vld [vmem:[%s0] sm:$0xff]
    %v119 = vld [vmem:[%s0 + $0x8] sm:$0xff]
    %v120 = vld [vmem:[%s0 + $0x10] sm:$0xff]
    %v121 = vld [vmem:[%s0 + $0x18] sm:$0xff]
    %v122 = vld [vmem:[%s0 + $0x20] sm:$0xff]
    %v123 = vld [vmem:[%s0 + $0x28] sm:$0xff]
    %v124 = vld [vmem:[%s0 + $0x30] sm:$0xff]
    %v125 = vld [vmem:[%s0 + $0x38] sm:$0xff]
    %v126 = vld [vmem:[#allocation3] sm:$0xff]
    %v127 = vld [vmem:[#allocation3 + $0x8] sm:$0xff]
    %v128 = vld [vmem:[#allocation3 + $0x10] sm:$0xff]
    %v129 = vld [vmem:[#allocation3 + $0x18] sm:$0xff]
    %v130 = vld [vmem:[#allocation3 + $0x20] sm:$0xff]
    %v131 = vld [vmem:[#allocation3 + $0x28] sm:$0xff]
    %v132 = vld [vmem:[#allocation3 + $0x30] sm:$0xff]
    %v133 = vld [vmem:[#allocation3 + $0x38] sm:$0xff]
    %v134 = vld [vmem:[#allocation6] sm:$0x3]
    %v136 = vperm.slane %v134, 0
    %v137 = vperm.slane %v134, 1
    %vm140 = vcmask 261120
    %v142 = vsel %vm140, %v118, 0
    %v145 = vsel %vm140, %v119, 0
    %v148 = vsel %vm140, %v120, 0
    %v151 = vsel %vm140, %v121, 0
    %v154 = vsel %vm140, %v122, 0
    %v157 = vsel %vm140, %v123, 0
    %v160 = vsel %vm140, %v124, 0
    %v163 = vsel %vm140, %v125, 0
    %165 = vmatpush.msra.mxu0 0.0
    %166 = vmatpush.msra.mxu0 0.0
    %167 = vmatpush.msra.mxu0 0.0
    %168 = vmatpush.msra.mxu0 0.0
    %169 = vmatpush.msra.mxu0 0.0
    %170 = vmatpush.msra.mxu0 0.0
    %171 = vmatpush.msra.mxu0 0.0
    %172 = vmatpush.msra.mxu0 0.0
    %173 = vmatpush.msra.mxu0 0.0
    %174 = vmatpush.msra.mxu0 0.0
    %175 = vmatpush.msra.mxu0 0.0
    %176 = vmatpush.msra.mxu0 0.0
    %177 = vmatpush.msra.mxu0 %v132
    %178 = vmatpush.msra.mxu0 %v130
    %179 = vmatpush.msra.mxu0 %v128
    %180 = vmatpush.msra.mxu0 %v126
    %181 = vmatmul.f32.gmra.mxu0 %v142
    %v182 = vpop.f32.mrf.mxu0
    %v183 = vadd.f32 %v136, %v182
    %184 = vmatmul.f32.gmra.mxu0 %v145
    %v185 = vpop.f32.mrf.mxu0
    %v186 = vadd.f32 %v136, %v185
    %187 = vmatmul.f32.gmra.mxu0 %v148
    %v188 = vpop.f32.mrf.mxu0
    %v189 = vadd.f32 %v136, %v188
    %190 = vmatmul.f32.gmra.mxu0 %v151
    %v191 = vpop.f32.mrf.mxu0
    %v192 = vadd.f32 %v136, %v191
    %193 = vmatmul.f32.gmra.mxu0 %v154
    %v194 = vpop.f32.mrf.mxu0
    %v195 = vadd.f32 %v136, %v194
    %196 = vmatmul.f32.gmra.mxu0 %v157
    %v197 = vpop.f32.mrf.mxu0
    %v198 = vadd.f32 %v136, %v197
    %199 = vmatmul.f32.gmra.mxu0 %v160
    %v200 = vpop.f32.mrf.mxu0
    %v201 = vadd.f32 %v136, %v200
    %202 = vmatmul.f32.gmra.mxu0 %v163
    %v203 = vpop.f32.mrf.mxu0
    %v204 = vadd.f32 %v136, %v203
    %205 = vdwg.mxu0
    %206 = vmatpush.msra.mxu0 0.0
    %207 = vmatpush.msra.mxu0 0.0
    %208 = vmatpush.msra.mxu0 0.0
    %209 = vmatpush.msra.mxu0 0.0
    %210 = vmatpush.msra.mxu0 0.0
    %211 = vmatpush.msra.mxu0 0.0
    %212 = vmatpush.msra.mxu0 0.0
    %213 = vmatpush.msra.mxu0 0.0
    %214 = vmatpush.msra.mxu0 0.0
    %215 = vmatpush.msra.mxu0 0.0
    %216 = vmatpush.msra.mxu0 0.0
    %217 = vmatpush.msra.mxu0 0.0
    %218 = vmatpush.msra.mxu0 %v133
    %219 = vmatpush.msra.mxu0 %v131
    %220 = vmatpush.msra.mxu0 %v129
    %221 = vmatpush.msra.mxu0 %v127
    %222 = vmatmul.f32.gmra.mxu0 %v142
    %v223 = vpop.f32.mrf.mxu0
    %v224 = vadd.f32 %v137, %v223
    %225 = vmatmul.f32.gmra.mxu0 %v145
    %v226 = vpop.f32.mrf.mxu0
    %v227 = vadd.f32 %v137, %v226
    %228 = vmatmul.f32.gmra.mxu0 %v148
    %v229 = vpop.f32.mrf.mxu0
    %v230 = vadd.f32 %v137, %v229
    %231 = vmatmul.f32.gmra.mxu0 %v151
    %v232 = vpop.f32.mrf.mxu0
    %v233 = vadd.f32 %v137, %v232
    %234 = vmatmul.f32.gmra.mxu0 %v154
    %v235 = vpop.f32.mrf.mxu0
    %v236 = vadd.f32 %v137, %v235
    %237 = vmatmul.f32.gmra.mxu0 %v157
    %v238 = vpop.f32.mrf.mxu0
    %v239 = vadd.f32 %v137, %v238
    %240 = vmatmul.f32.gmra.mxu0 %v160
    %v241 = vpop.f32.mrf.mxu0
    %v242 = vadd.f32 %v137, %v241
    %243 = vmatmul.f32.gmra.mxu0 %v163
    %v244 = vpop.f32.mrf.mxu0
    %v245 = vadd.f32 %v137, %v244
    %246 = vdwg.mxu0
    %247 = vst [vmem:[#allocation2] sm:$0xff] %v183
    %248 = vst [vmem:[#allocation2 + $0x8] sm:$0xff] %v224
    %249 = vst [vmem:[#allocation2 + $0x10] sm:$0xff] %v186
    %250 = vst [vmem:[#allocation2 + $0x18] sm:$0xff] %v227
    %251 = vst [vmem:[#allocation2 + $0x20] sm:$0xff] %v189
    %252 = vst [vmem:[#allocation2 + $0x28] sm:$0xff] %v230
    %253 = vst [vmem:[#allocation2 + $0x30] sm:$0xff] %v192
    %254 = vst [vmem:[#allocation2 + $0x38] sm:$0xff] %v233
    %255 = vst [vmem:[#allocation2 + $0x40] sm:$0xff] %v195
    %256 = vst [vmem:[#allocation2 + $0x48] sm:$0xff] %v236
    %257 = vst [vmem:[#allocation2 + $0x50] sm:$0xff] %v198
    %258 = vst [vmem:[#allocation2 + $0x58] sm:$0xff] %v239
    %259 = vst [vmem:[#allocation2 + $0x60] sm:$0xff] %v201
    %260 = vst [vmem:[#allocation2 + $0x68] sm:$0xff] %v242
    %261 = vst [vmem:[#allocation2 + $0x70] sm:$0xff] %v204
    %262 = vst [vmem:[#allocation2 + $0x78] sm:$0xff] %v245
    %v263 = vld [vmem:[%s4] sm:$0xff]
    %v264 = vld [vmem:[%s4 + $0x8] sm:$0xff]
    %v265 = vld [vmem:[%s4 + $0x10] sm:$0xff]
    %v266 = vld [vmem:[%s4 + $0x18] sm:$0xff]
    %v267 = vld [vmem:[#allocation8] sm:$0xff]
    %v268 = vld [vmem:[#allocation8 + $0x8] sm:$0xff]
    %v269 = vld [vmem:[#allocation8 + $0x10] sm:$0xff]
    %v270 = vld [vmem:[#allocation8 + $0x18] sm:$0xff]
    %v271 = vld [vmem:[%s6] sm:$0x1]
    %v273 = vperm.slane %v271, 0
    %v274 = vld [vmem:[%s7] sm:$0x1]
    %v276 = vperm.slane %v274, 0
    %s277 = smul.u32 0, 2
    %s278 = smul.addr %s277, 8
    %s279 = scalar_lea.vmem [#allocation2], %s278
    %v280 = vld [vmem:[%s279] sm:$0xff]
    %s281 = smul.u32 7, 2
    %s282 = smul.addr %s281, 8
    %s283 = scalar_lea.vmem [#allocation2], %s282
    %v284 = vld [vmem:[%s283 + $0x8] sm:$0xff]
    %v286 = vsel %vm140, 0.0, 0
    %288 = vmatpush.msra.mxu0 0.0
    %289 = vmatpush.msra.mxu0 0.0
    %290 = vmatpush.msra.mxu0 0.0
    %291 = vmatpush.msra.mxu0 0.0
    %292 = vmatpush.msra.mxu0 0.0
    %293 = vmatpush.msra.mxu0 0.0
    %294 = vmatpush.msra.mxu0 0.0
    %295 = vmatpush.msra.mxu0 0.0
    %296 = vmatpush.msra.mxu0 0.0
    %297 = vmatpush.msra.mxu0 0.0
    %298 = vmatpush.msra.mxu0 0.0
    %299 = vmatpush.msra.mxu0 0.0
    %300 = vmatpush.msra.mxu0 %v266
    %301 = vmatpush.msra.mxu0 %v265
    %302 = vmatpush.msra.mxu0 %v264
    %303 = vmatpush.msra.mxu0 %v263
    %304 = vmatmul.f32.gmra.mxu0 %v286
    %v305 = vpop.f32.mrf.mxu0
    %v306 = vadd.f32 0.0, %v305
    %307 = vdwg.mxu0
    %v308 = vadd.f32 %v280, %v306
    %v309 = vxor.u32 %v308, 2147483648
    %v310 = vmul.f32 %v309, 1.442695
    %v311 = vpow.pop %v310
    %v312 = vadd.f32 %v311, 1.0
    %v313 = vrcp.pop %v312
    %v314 = vmul.f32 %v312, %v313
    %v315 = vsub.f32 1.0, %v314
    %v316 = vmul.f32 %v313, %v315
    %v317 = vadd.f32 %v313, %v316
    %vm318 = vweird.f32 %v312
    %vm319 = vweird.f32 %v313
    %vm320 = vmor %vm318, %vm319
    %v321 = vsel %vm320, %v313, %v317
    %v322 = vand.u32 2147483647, %v312
    %vm323 = vcmp.eq.f32.partialorder %v322, 8.507059e+37
    %v324 = vand.u32 %v312, 2147483648
    %v325 = vor.u32 1.1754944e-38, %v324
    %v326 = vsel %vm323, %v325, %v321
    %v327 = vmul.f32 1.0, %v326
    %328 = vrot.lane.b32.xlu0 %v273, 64
    %v329 = vpop.permute.xlu0 %328
    %v331 = vadd.f32 %v306, %v329
    %333 = vrot.lane.b32.xlu0 %v331, 64
    %v334 = vpop.permute.xlu0 %333
    %v336 = vmul.f32 %v327, %v334
    %338 = vrot.lane.b32.xlu0 %v336, 64
    %v339 = vpop.permute.xlu0 %338
    %v341 = vadd.f32 %v280, %v339
    %v342 = vtanh.pop %v341
    %v343 = vsub.f32 1.0, %v327
    %345 = vrot.lane.b32.xlu0 %v342, 96
    %v346 = vpop.permute.xlu0 %345
    %v348 = vmul.f32 %v343, %v346
    %v349 = vmul.f32 %v327, 0.0
    %v350 = vadd.f32 %v348, %v349
    %351 = vmatpush.msra.mxu0 0.0
    %352 = vmatpush.msra.mxu0 0.0
    %353 = vmatpush.msra.mxu0 0.0
    %354 = vmatpush.msra.mxu0 0.0
    %355 = vmatpush.msra.mxu0 0.0
    %356 = vmatpush.msra.mxu0 0.0
    %357 = vmatpush.msra.mxu0 0.0
    %358 = vmatpush.msra.mxu0 0.0
    %359 = vmatpush.msra.mxu0 0.0
    %360 = vmatpush.msra.mxu0 0.0
    %361 = vmatpush.msra.mxu0 0.0
    %362 = vmatpush.msra.mxu0 0.0
    %363 = vmatpush.msra.mxu0 %v270
    %364 = vmatpush.msra.mxu0 %v269
    %365 = vmatpush.msra.mxu0 %v268
    %366 = vmatpush.msra.mxu0 %v267
    %367 = vmatmul.f32.gmra.mxu0 %v286
    %v368 = vpop.f32.mrf.mxu0
    %v369 = vadd.f32 0.0, %v368
    %370 = vdwg.mxu0
    %v371 = vadd.f32 %v284, %v369
    %v372 = vxor.u32 %v371, 2147483648
    %v373 = vmul.f32 %v372, 1.442695
    %v374 = vpow.pop %v373
    %v375 = vadd.f32 %v374, 1.0
    %v376 = vrcp.pop %v375
    %v377 = vmul.f32 %v375, %v376
    %v378 = vsub.f32 1.0, %v377
    %v379 = vmul.f32 %v376, %v378
    %v380 = vadd.f32 %v376, %v379
    %vm381 = vweird.f32 %v375
    %vm382 = vweird.f32 %v376
    %vm383 = vmor %vm381, %vm382
    %v384 = vsel %vm383, %v376, %v380
    %v385 = vand.u32 2147483647, %v375
    %vm386 = vcmp.eq.f32.partialorder %v385, 8.507059e+37
    %v387 = vand.u32 %v375, 2147483648
    %v388 = vor.u32 1.1754944e-38, %v387
    %v389 = vsel %vm386, %v388, %v384
    %v390 = vmul.f32 1.0, %v389
    %391 = vrot.lane.b32.xlu0 %v276, 64
    %v392 = vpop.permute.xlu0 %391
    %v394 = vadd.f32 %v369, %v392
    %396 = vrot.lane.b32.xlu0 %v394, 64
    %v397 = vpop.permute.xlu0 %396
    %v399 = vmul.f32 %v390, %v397
    %401 = vrot.lane.b32.xlu0 %v399, 64
    %v402 = vpop.permute.xlu0 %401
    %v404 = vadd.f32 %v284, %v402
    %v405 = vtanh.pop %v404
    %v406 = vsub.f32 1.0, %v390
    %408 = vrot.lane.b32.xlu0 %v405, 96
    %v409 = vpop.permute.xlu0 %408
    %v411 = vmul.f32 %v406, %v409
    %v412 = vmul.f32 %v390, 0.0
    %v413 = vadd.f32 %v411, %v412
    %v414 = vld [vmem:[%s1] sm:$0xff]
    %s415 = scalar_lea.vmem %s1, 56
    %v416 = vld [vmem:[%s415] sm:$0xff]
    %418 = vrot.lane.b32.xlu0 %v414, 32
    %v419 = vpop.permute.xlu0 %418
    %v421 = vmul.f32 %v350, %v419
    %423 = vrot.lane.b32.xlu0 %v416, 32
    %v424 = vpop.permute.xlu0 %423
    %v426 = vmul.f32 %v413, %v424
    %428 = vrot.lane.b32.xlu0 %v421, 96
    %v429 = vpop.permute.xlu0 %428
    %431 = vst.msk [vmem:[#allocation12] sm:$0xff] %vm140, %v429
    %s432 = scalar_lea.vmem [#allocation12], 56
    %vm433 = vcmask 523520
    %434 = vst.msk [vmem:[%s432] sm:$0xff] %vm433, %v426
    %v435 = vsub.f32 1.0, %v414
    %v436 = vmul.f32 %v435, 0.0
    %438 = vrot.lane.b32.xlu0 %v436, 32
    %v439 = vpop.permute.xlu0 %438
    %v441 = vadd.f32 %v421, %v439
    %v442 = vsub.f32 1.0, %v416
    %v443 = vmul.f32 %v442, 0.0
    %445 = vrot.lane.b32.xlu0 %v443, 32
    %v446 = vpop.permute.xlu0 %445
    %v448 = vadd.f32 %v426, %v446
    %s449 = smul.u32 1, 2
    %s450 = smul.addr %s449, 8
    %s451 = scalar_lea.vmem [#allocation2], %s450
    %v452 = vld [vmem:[%s451] sm:$0xff]
    %s453 = smul.u32 6, 2
    %s454 = smul.addr %s453, 8
    %s455 = scalar_lea.vmem [#allocation2], %s454
    %v456 = vld [vmem:[%s455 + $0x8] sm:$0xff]
    %458 = vrot.lane.b32.xlu0 %v441, 96
    %v459 = vpop.permute.xlu0 %458
    %v460 = vsel %vm140, %v459, 0
    %462 = vmatpush.msra.mxu0 0.0
    %463 = vmatpush.msra.mxu0 0.0
    %464 = vmatpush.msra.mxu0 0.0
    %465 = vmatpush.msra.mxu0 0.0
    %466 = vmatpush.msra.mxu0 0.0
    %467 = vmatpush.msra.mxu0 0.0
    %468 = vmatpush.msra.mxu0 0.0
    %469 = vmatpush.msra.mxu0 0.0
    %470 = vmatpush.msra.mxu0 0.0
    %471 = vmatpush.msra.mxu0 0.0
    %472 = vmatpush.msra.mxu0 0.0
    %473 = vmatpush.msra.mxu0 0.0
    %474 = vmatpush.msra.mxu0 %v266
    %475 = vmatpush.msra.mxu0 %v265
    %476 = vmatpush.msra.mxu0 %v264
    %477 = vmatpush.msra.mxu0 %v263
    %478 = vmatmul.f32.gmra.mxu0 %v460
    %v479 = vpop.f32.mrf.mxu0
    %v480 = vadd.f32 0.0, %v479
    %481 = vdwg.mxu0
    %v482 = vadd.f32 %v452, %v480
    %v483 = vxor.u32 %v482, 2147483648
    %v484 = vmul.f32 %v483, 1.442695
    %v485 = vpow.pop %v484
    %v486 = vadd.f32 %v485, 1.0
    %v487 = vrcp.pop %v486
    %v488 = vmul.f32 %v486, %v487
    %v489 = vsub.f32 1.0, %v488
    %v490 = vmul.f32 %v487, %v489
    %v491 = vadd.f32 %v487, %v490
    %vm492 = vweird.f32 %v486
    %vm493 = vweird.f32 %v487
    %vm494 = vmor %vm492, %vm493
    %v495 = vsel %vm494, %v487, %v491
    %v496 = vand.u32 2147483647, %v486
    %vm497 = vcmp.eq.f32.partialorder %v496, 8.507059e+37
    %v498 = vand.u32 %v486, 2147483648
    %v499 = vor.u32 1.1754944e-38, %v498
    %v500 = vsel %vm497, %v499, %v495
    %v501 = vmul.f32 1.0, %v500
    %v502 = vadd.f32 %v480, %v329
    %504 = vrot.lane.b32.xlu0 %v502, 64
    %v505 = vpop.permute.xlu0 %504
    %v507 = vmul.f32 %v501, %v505
    %509 = vrot.lane.b32.xlu0 %v507, 64
    %v510 = vpop.permute.xlu0 %509
    %v512 = vadd.f32 %v452, %v510
    %v513 = vtanh.pop %v512
    %v514 = vsub.f32 1.0, %v501
    %516 = vrot.lane.b32.xlu0 %v513, 96
    %v517 = vpop.permute.xlu0 %516
    %v519 = vmul.f32 %v514, %v517
    %v520 = vmul.f32 %v501, %v441
    %v521 = vadd.f32 %v519, %v520
    %523 = vrot.lane.b32.xlu0 %v448, 96
    %v524 = vpop.permute.xlu0 %523
    %v525 = vsel %vm140, %v524, 0
    %527 = vmatpush.msra.mxu0 0.0
    %528 = vmatpush.msra.mxu0 0.0
    %529 = vmatpush.msra.mxu0 0.0
    %530 = vmatpush.msra.mxu0 0.0
    %531 = vmatpush.msra.mxu0 0.0
    %532 = vmatpush.msra.mxu0 0.0
    %533 = vmatpush.msra.mxu0 0.0
    %534 = vmatpush.msra.mxu0 0.0
    %535 = vmatpush.msra.mxu0 0.0
    %536 = vmatpush.msra.mxu0 0.0
    %537 = vmatpush.msra.mxu0 0.0
    %538 = vmatpush.msra.mxu0 0.0
    %539 = vmatpush.msra.mxu0 %v270
    %540 = vmatpush.msra.mxu0 %v269
    %541 = vmatpush.msra.mxu0 %v268
    %542 = vmatpush.msra.mxu0 %v267
    %543 = vmatmul.f32.gmra.mxu0 %v525
    %v544 = vpop.f32.mrf.mxu0
    %v545 = vadd.f32 0.0, %v544
    %546 = vdwg.mxu0
    %v547 = vadd.f32 %v456, %v545
    %v548 = vxor.u32 %v547, 2147483648
    %v549 = vmul.f32 %v548, 1.442695
    %v550 = vpow.pop %v549
    %v551 = vadd.f32 %v550, 1.0
    %v552 = vrcp.pop %v551
    %v553 = vmul.f32 %v551, %v552
    %v554 = vsub.f32 1.0, %v553
    %v555 = vmul.f32 %v552, %v554
    %v556 = vadd.f32 %v552, %v555
    %vm557 = vweird.f32 %v551
    %vm558 = vweird.f32 %v552
    %vm559 = vmor %vm557, %vm558
    %v560 = vsel %vm559, %v552, %v556
    %v561 = vand.u32 2147483647, %v551
    %vm562 = vcmp.eq.f32.partialorder %v561, 8.507059e+37
    %v563 = vand.u32 %v551, 2147483648
    %v564 = vor.u32 1.1754944e-38, %v563
    %v565 = vsel %vm562, %v564, %v560
    %v566 = vmul.f32 1.0, %v565
    %v567 = vadd.f32 %v545, %v392
    %569 = vrot.lane.b32.xlu0 %v567, 64
    %v570 = vpop.permute.xlu0 %569
    %v572 = vmul.f32 %v566, %v570
    %574 = vrot.lane.b32.xlu0 %v572, 64
    %v575 = vpop.permute.xlu0 %574
    %v577 = vadd.f32 %v456, %v575
    %v578 = vtanh.pop %v577
    %v579 = vsub.f32 1.0, %v566
    %581 = vrot.lane.b32.xlu0 %v578, 96
    %v582 = vpop.permute.xlu0 %581
    %v584 = vmul.f32 %v579, %v582
    %v585 = vmul.f32 %v566, %v448
    %v586 = vadd.f32 %v584, %v585
    %s587 = scalar_lea.vmem %s1, 8
    %v588 = vld [vmem:[%s587] sm:$0xff]
    %s589 = scalar_lea.vmem %s1, 48
    %v590 = vld [vmem:[%s589] sm:$0xff]
    %592 = vrot.lane.b32.xlu0 %v588, 32
    %v593 = vpop.permute.xlu0 %592
    %v595 = vmul.f32 %v521, %v593
    %597 = vrot.lane.b32.xlu0 %v590, 32
    %v598 = vpop.permute.xlu0 %597
    %v600 = vmul.f32 %v586, %v598
    %602 = vrot.lane.b32.xlu0 %v595, 96
    %v603 = vpop.permute.xlu0 %602
    %s605 = scalar_lea.vmem [#allocation12], 8
    %606 = vst.msk [vmem:[%s605] sm:$0xff] %vm140, %v603
    %s607 = scalar_lea.vmem [#allocation12], 48
    %608 = vst.msk [vmem:[%s607] sm:$0xff] %vm433, %v600
    %v609 = vsub.f32 1.0, %v588
    %611 = vrot.lane.b32.xlu0 %v609, 32
    %v612 = vpop.permute.xlu0 %611
    %v614 = vmul.f32 %v441, %v612
    %v615 = vadd.f32 %v595, %v614
    %v616 = vsub.f32 1.0, %v590
    %618 = vrot.lane.b32.xlu0 %v616, 32
    %v619 = vpop.permute.xlu0 %618
    %v621 = vmul.f32 %v448, %v619
    %v622 = vadd.f32 %v600, %v621
    %s623 = smul.u32 2, 2
    %s624 = smul.addr %s623, 8
    %s625 = scalar_lea.vmem [#allocation2], %s624
    %v626 = vld [vmem:[%s625] sm:$0xff]
    %s627 = smul.u32 5, 2
    %s628 = smul.addr %s627, 8
    %s629 = scalar_lea.vmem [#allocation2], %s628
    %v630 = vld [vmem:[%s629 + $0x8] sm:$0xff]
    %632 = vrot.lane.b32.xlu0 %v615, 96
    %v633 = vpop.permute.xlu0 %632
    %v634 = vsel %vm140, %v633, 0
    %636 = vmatpush.msra.mxu0 0.0
    %637 = vmatpush.msra.mxu0 0.0
    %638 = vmatpush.msra.mxu0 0.0
    %639 = vmatpush.msra.mxu0 0.0
    %640 = vmatpush.msra.mxu0 0.0
    %641 = vmatpush.msra.mxu0 0.0
    %642 = vmatpush.msra.mxu0 0.0
    %643 = vmatpush.msra.mxu0 0.0
    %644 = vmatpush.msra.mxu0 0.0
    %645 = vmatpush.msra.mxu0 0.0
    %646 = vmatpush.msra.mxu0 0.0
    %647 = vmatpush.msra.mxu0 0.0
    %648 = vmatpush.msra.mxu0 %v266
    %649 = vmatpush.msra.mxu0 %v265
    %650 = vmatpush.msra.mxu0 %v264
    %651 = vmatpush.msra.mxu0 %v263
    %652 = vmatmul.f32.gmra.mxu0 %v634
    %v653 = vpop.f32.mrf.mxu0
    %v654 = vadd.f32 0.0, %v653
    %655 = vdwg.mxu0
    %v656 = vadd.f32 %v626, %v654
    %v657 = vxor.u32 %v656, 2147483648
    %v658 = vmul.f32 %v657, 1.442695
    %v659 = vpow.pop %v658
    %v660 = vadd.f32 %v659, 1.0
    %v661 = vrcp.pop %v660
    %v662 = vmul.f32 %v660, %v661
    %v663 = vsub.f32 1.0, %v662
    %v664 = vmul.f32 %v661, %v663
    %v665 = vadd.f32 %v661, %v664
    %vm666 = vweird.f32 %v660
    %vm667 = vweird.f32 %v661
    %vm668 = vmor %vm666, %vm667
    %v669 = vsel %vm668, %v661, %v665
    %v670 = vand.u32 2147483647, %v660
    %vm671 = vcmp.eq.f32.partialorder %v670, 8.507059e+37
    %v672 = vand.u32 %v660, 2147483648
    %v673 = vor.u32 1.1754944e-38, %v672
    %v674 = vsel %vm671, %v673, %v669
    %v675 = vmul.f32 1.0, %v674
    %v676 = vadd.f32 %v654, %v329
    %678 = vrot.lane.b32.xlu0 %v676, 64
    %v679 = vpop.permute.xlu0 %678
    %v681 = vmul.f32 %v675, %v679
    %683 = vrot.lane.b32.xlu0 %v681, 64
    %v684 = vpop.permute.xlu0 %683
    %v686 = vadd.f32 %v626, %v684
    %v687 = vtanh.pop %v686
    %v688 = vsub.f32 1.0, %v675
    %690 = vrot.lane.b32.xlu0 %v687, 96
    %v691 = vpop.permute.xlu0 %690
    %v693 = vmul.f32 %v688, %v691
    %v694 = vmul.f32 %v675, %v615
    %v695 = vadd.f32 %v693, %v694
    %697 = vrot.lane.b32.xlu0 %v622, 96
    %v698 = vpop.permute.xlu0 %697
    %v699 = vsel %vm140, %v698, 0
    %701 = vmatpush.msra.mxu0 0.0
    %702 = vmatpush.msra.mxu0 0.0
    %703 = vmatpush.msra.mxu0 0.0
    %704 = vmatpush.msra.mxu0 0.0
    %705 = vmatpush.msra.mxu0 0.0
    %706 = vmatpush.msra.mxu0 0.0
    %707 = vmatpush.msra.mxu0 0.0
    %708 = vmatpush.msra.mxu0 0.0
    %709 = vmatpush.msra.mxu0 0.0
    %710 = vmatpush.msra.mxu0 0.0
    %711 = vmatpush.msra.mxu0 0.0
    %712 = vmatpush.msra.mxu0 0.0
    %713 = vmatpush.msra.mxu0 %v270
    %714 = vmatpush.msra.mxu0 %v269
    %715 = vmatpush.msra.mxu0 %v268
    %716 = vmatpush.msra.mxu0 %v267
    %717 = vmatmul.f32.gmra.mxu0 %v699
    %v718 = vpop.f32.mrf.mxu0
    %v719 = vadd.f32 0.0, %v718
    %720 = vdwg.mxu0
    %v721 = vadd.f32 %v630, %v719
    %v722 = vxor.u32 %v721, 2147483648
    %v723 = vmul.f32 %v722, 1.442695
    %v724 = vpow.pop %v723
    %v725 = vadd.f32 %v724, 1.0
    %v726 = vrcp.pop %v725
    %v727 = vmul.f32 %v725, %v726
    %v728 = vsub.f32 1.0, %v727
    %v729 = vmul.f32 %v726, %v728
    %v730 = vadd.f32 %v726, %v729
    %vm731 = vweird.f32 %v725
    %vm732 = vweird.f32 %v726
    %vm733 = vmor %vm731, %vm732
    %v734 = vsel %vm733, %v726, %v730
    %v735 = vand.u32 2147483647, %v725
    %vm736 = vcmp.eq.f32.partialorder %v735, 8.507059e+37
    %v737 = vand.u32 %v725, 2147483648
    %v738 = vor.u32 1.1754944e-38, %v737
    %v739 = vsel %vm736, %v738, %v734
    %v740 = vmul.f32 1.0, %v739
    %v741 = vadd.f32 %v719, %v392
    %743 = vrot.lane.b32.xlu0 %v741, 64
    %v744 = vpop.permute.xlu0 %743
    %v746 = vmul.f32 %v740, %v744
    %748 = vrot.lane.b32.xlu0 %v746, 64
    %v749 = vpop.permute.xlu0 %748
    %v751 = vadd.f32 %v630, %v749
    %v752 = vtanh.pop %v751
    %v753 = vsub.f32 1.0, %v740
    %755 = vrot.lane.b32.xlu0 %v752, 96
    %v756 = vpop.permute.xlu0 %755
    %v758 = vmul.f32 %v753, %v756
    %v759 = vmul.f32 %v740, %v622
    %v760 = vadd.f32 %v758, %v759
    %s761 = scalar_lea.vmem %s1, 16
    %v762 = vld [vmem:[%s761] sm:$0xff]
    %s763 = scalar_lea.vmem %s1, 40
    %v764 = vld [vmem:[%s763] sm:$0xff]
    %766 = vrot.lane.b32.xlu0 %v762, 32
    %v767 = vpop.permute.xlu0 %766
    %v769 = vmul.f32 %v695, %v767
    %771 = vrot.lane.b32.xlu0 %v764, 32
    %v772 = vpop.permute.xlu0 %771
    %v774 = vmul.f32 %v760, %v772
    %776 = vrot.lane.b32.xlu0 %v769, 96
    %v777 = vpop.permute.xlu0 %776
    %s779 = scalar_lea.vmem [#allocation12], 16
    %780 = vst.msk [vmem:[%s779] sm:$0xff] %vm140, %v777
    %s781 = scalar_lea.vmem [#allocation12], 40
    %782 = vst.msk [vmem:[%s781] sm:$0xff] %vm433, %v774
    %v783 = vsub.f32 1.0, %v762
    %785 = vrot.lane.b32.xlu0 %v783, 32
    %v786 = vpop.permute.xlu0 %785
    %v788 = vmul.f32 %v615, %v786
    %v789 = vadd.f32 %v769, %v788
    %v790 = vsub.f32 1.0, %v764
    %792 = vrot.lane.b32.xlu0 %v790, 32
    %v793 = vpop.permute.xlu0 %792
    %v795 = vmul.f32 %v622, %v793
    %v796 = vadd.f32 %v774, %v795
    %s797 = smul.u32 3, 2
    %s798 = smul.addr %s797, 8
    %s799 = scalar_lea.vmem [#allocation2], %s798
    %v800 = vld [vmem:[%s799] sm:$0xff]
    %s801 = smul.u32 4, 2
    %s802 = smul.addr %s801, 8
    %s803 = scalar_lea.vmem [#allocation2], %s802
    %v804 = vld [vmem:[%s803 + $0x8] sm:$0xff]
    %806 = vrot.lane.b32.xlu0 %v789, 96
    %v807 = vpop.permute.xlu0 %806
    %v808 = vsel %vm140, %v807, 0
    %810 = vmatpush.msra.mxu0 0.0
    %811 = vmatpush.msra.mxu0 0.0
    %812 = vmatpush.msra.mxu0 0.0
    %813 = vmatpush.msra.mxu0 0.0
    %814 = vmatpush.msra.mxu0 0.0
    %815 = vmatpush.msra.mxu0 0.0
    %816 = vmatpush.msra.mxu0 0.0
    %817 = vmatpush.msra.mxu0 0.0
    %818 = vmatpush.msra.mxu0 0.0
    %819 = vmatpush.msra.mxu0 0.0
    %820 = vmatpush.msra.mxu0 0.0
    %821 = vmatpush.msra.mxu0 0.0
    %822 = vmatpush.msra.mxu0 %v266
    %823 = vmatpush.msra.mxu0 %v265
    %824 = vmatpush.msra.mxu0 %v264
    %825 = vmatpush.msra.mxu0 %v263
    %826 = vmatmul.f32.gmra.mxu0 %v808
    %v827 = vpop.f32.mrf.mxu0
    %v828 = vadd.f32 0.0, %v827
    %829 = vdwg.mxu0
    %v830 = vadd.f32 %v800, %v828
    %v831 = vxor.u32 %v830, 2147483648
    %v832 = vmul.f32 %v831, 1.442695
    %v833 = vpow.pop %v832
    %v834 = vadd.f32 %v833, 1.0
    %v835 = vrcp.pop %v834
    %v836 = vmul.f32 %v834, %v835
    %v837 = vsub.f32 1.0, %v836
    %v838 = vmul.f32 %v835, %v837
    %v839 = vadd.f32 %v835, %v838
    %vm840 = vweird.f32 %v834
    %vm841 = vweird.f32 %v835
    %vm842 = vmor %vm840, %vm841
    %v843 = vsel %vm842, %v835, %v839
    %v844 = vand.u32 2147483647, %v834
    %vm845 = vcmp.eq.f32.partialorder %v844, 8.507059e+37
    %v846 = vand.u32 %v834, 2147483648
    %v847 = vor.u32 1.1754944e-38, %v846
    %v848 = vsel %vm845, %v847, %v843
    %v849 = vmul.f32 1.0, %v848
    %v850 = vadd.f32 %v828, %v329
    %852 = vrot.lane.b32.xlu0 %v850, 64
    %v853 = vpop.permute.xlu0 %852
    %v855 = vmul.f32 %v849, %v853
    %857 = vrot.lane.b32.xlu0 %v855, 64
    %v858 = vpop.permute.xlu0 %857
    %v860 = vadd.f32 %v800, %v858
    %v861 = vtanh.pop %v860
    %v862 = vsub.f32 1.0, %v849
    %864 = vrot.lane.b32.xlu0 %v861, 96
    %v865 = vpop.permute.xlu0 %864
    %v867 = vmul.f32 %v862, %v865
    %v868 = vmul.f32 %v849, %v789
    %v869 = vadd.f32 %v867, %v868
    %871 = vrot.lane.b32.xlu0 %v796, 96
    %v872 = vpop.permute.xlu0 %871
    %v873 = vsel %vm140, %v872, 0
    %875 = vmatpush.msra.mxu0 0.0
    %876 = vmatpush.msra.mxu0 0.0
    %877 = vmatpush.msra.mxu0 0.0
    %878 = vmatpush.msra.mxu0 0.0
    %879 = vmatpush.msra.mxu0 0.0
    %880 = vmatpush.msra.mxu0 0.0
    %881 = vmatpush.msra.mxu0 0.0
    %882 = vmatpush.msra.mxu0 0.0
    %883 = vmatpush.msra.mxu0 0.0
    %884 = vmatpush.msra.mxu0 0.0
    %885 = vmatpush.msra.mxu0 0.0
    %886 = vmatpush.msra.mxu0 0.0
    %887 = vmatpush.msra.mxu0 %v270
    %888 = vmatpush.msra.mxu0 %v269
    %889 = vmatpush.msra.mxu0 %v268
    %890 = vmatpush.msra.mxu0 %v267
    %891 = vmatmul.f32.gmra.mxu0 %v873
    %v892 = vpop.f32.mrf.mxu0
    %v893 = vadd.f32 0.0, %v892
    %894 = vdwg.mxu0
    %v895 = vadd.f32 %v804, %v893
    %v896 = vxor.u32 %v895, 2147483648
    %v897 = vmul.f32 %v896, 1.442695
    %v898 = vpow.pop %v897
    %v899 = vadd.f32 %v898, 1.0
    %v900 = vrcp.pop %v899
    %v901 = vmul.f32 %v899, %v900
    %v902 = vsub.f32 1.0, %v901
    %v903 = vmul.f32 %v900, %v902
    %v904 = vadd.f32 %v900, %v903
    %vm905 = vweird.f32 %v899
    %vm906 = vweird.f32 %v900
    %vm907 = vmor %vm905, %vm906
    %v908 = vsel %vm907, %v900, %v904
    %v909 = vand.u32 2147483647, %v899
    %vm910 = vcmp.eq.f32.partialorder %v909, 8.507059e+37
    %v911 = vand.u32 %v899, 2147483648
    %v912 = vor.u32 1.1754944e-38, %v911
    %v913 = vsel %vm910, %v912, %v908
    %v914 = vmul.f32 1.0, %v913
    %v915 = vadd.f32 %v893, %v392
    %917 = vrot.lane.b32.xlu0 %v915, 64
    %v918 = vpop.permute.xlu0 %917
    %v920 = vmul.f32 %v914, %v918
    %922 = vrot.lane.b32.xlu0 %v920, 64
    %v923 = vpop.permute.xlu0 %922
    %v925 = vadd.f32 %v804, %v923
    %v926 = vtanh.pop %v925
    %v927 = vsub.f32 1.0, %v914
    %929 = vrot.lane.b32.xlu0 %v926, 96
    %v930 = vpop.permute.xlu0 %929
    %v932 = vmul.f32 %v927, %v930
    %v933 = vmul.f32 %v914, %v796
    %v934 = vadd.f32 %v932, %v933
    %s935 = scalar_lea.vmem %s1, 24
    %v936 = vld [vmem:[%s935] sm:$0xff]
    %s937 = scalar_lea.vmem %s1, 32
    %v938 = vld [vmem:[%s937] sm:$0xff]
    %940 = vrot.lane.b32.xlu0 %v936, 32
    %v941 = vpop.permute.xlu0 %940
    %v943 = vmul.f32 %v869, %v941
    %945 = vrot.lane.b32.xlu0 %v938, 32
    %v946 = vpop.permute.xlu0 %945
    %v948 = vmul.f32 %v934, %v946
    %950 = vrot.lane.b32.xlu0 %v943, 96
    %v951 = vpop.permute.xlu0 %950
    %s953 = scalar_lea.vmem [#allocation12], 24
    %954 = vst.msk [vmem:[%s953] sm:$0xff] %vm140, %v951
    %s955 = scalar_lea.vmem [#allocation12], 32
    %956 = vst.msk [vmem:[%s955] sm:$0xff] %vm433, %v948
    %v957 = vsub.f32 1.0, %v936
    %959 = vrot.lane.b32.xlu0 %v957, 32
    %v960 = vpop.permute.xlu0 %959
    %v962 = vmul.f32 %v789, %v960
    %v963 = vadd.f32 %v943, %v962
    %v964 = vsub.f32 1.0, %v938
    %966 = vrot.lane.b32.xlu0 %v964, 32
    %v967 = vpop.permute.xlu0 %966
    %v969 = vmul.f32 %v796, %v967
    %v970 = vadd.f32 %v948, %v969
    %v971 = vld [vmem:[%s803] sm:$0xff]
    %v972 = vld [vmem:[%s799 + $0x8] sm:$0xff]
    %974 = vrot.lane.b32.xlu0 %v963, 96
    %v975 = vpop.permute.xlu0 %974
    %v976 = vsel %vm140, %v975, 0
    %978 = vmatpush.msra.mxu0 0.0
    %979 = vmatpush.msra.mxu0 0.0
    %980 = vmatpush.msra.mxu0 0.0
    %981 = vmatpush.msra.mxu0 0.0
    %982 = vmatpush.msra.mxu0 0.0
    %983 = vmatpush.msra.mxu0 0.0
    %984 = vmatpush.msra.mxu0 0.0
    %985 = vmatpush.msra.mxu0 0.0
    %986 = vmatpush.msra.mxu0 0.0
    %987 = vmatpush.msra.mxu0 0.0
    %988 = vmatpush.msra.mxu0 0.0
    %989 = vmatpush.msra.mxu0 0.0
    %990 = vmatpush.msra.mxu0 %v266
    %991 = vmatpush.msra.mxu0 %v265
    %992 = vmatpush.msra.mxu0 %v264
    %993 = vmatpush.msra.mxu0 %v263
    %994 = vmatmul.f32.gmra.mxu0 %v976
    %v995 = vpop.f32.mrf.mxu0
    %v996 = vadd.f32 0.0, %v995
    %997 = vdwg.mxu0
    %v998 = vadd.f32 %v971, %v996
    %v999 = vxor.u32 %v998, 2147483648
    %v1000 = vmul.f32 %v999, 1.442695
    %v1001 = vpow.pop %v1000
    %v1002 = vadd.f32 %v1001, 1.0
    %v1003 = vrcp.pop %v1002
    %v1004 = vmul.f32 %v1002, %v1003
    %v1005 = vsub.f32 1.0, %v1004
    %v1006 = vmul.f32 %v1003, %v1005
    %v1007 = vadd.f32 %v1003, %v1006
    %vm1008 = vweird.f32 %v1002
    %vm1009 = vweird.f32 %v1003
    %vm1010 = vmor %vm1008, %vm1009
    %v1011 = vsel %vm1010, %v1003, %v1007
    %v1012 = vand.u32 2147483647, %v1002
    %vm1013 = vcmp.eq.f32.partialorder %v1012, 8.507059e+37
    %v1014 = vand.u32 %v1002, 2147483648
    %v1015 = vor.u32 1.1754944e-38, %v1014
    %v1016 = vsel %vm1013, %v1015, %v1011
    %v1017 = vmul.f32 1.0, %v1016
    %v1018 = vadd.f32 %v996, %v329
    %1020 = vrot.lane.b32.xlu0 %v1018, 64
    %v1021 = vpop.permute.xlu0 %1020
    %v1023 = vmul.f32 %v1017, %v1021
    %1025 = vrot.lane.b32.xlu0 %v1023, 64
    %v1026 = vpop.permute.xlu0 %1025
    %v1028 = vadd.f32 %v971, %v1026
    %v1029 = vtanh.pop %v1028
    %v1030 = vsub.f32 1.0, %v1017
    %1032 = vrot.lane.b32.xlu0 %v1029, 96
    %v1033 = vpop.permute.xlu0 %1032
    %v1035 = vmul.f32 %v1030, %v1033
    %v1036 = vmul.f32 %v1017, %v963
    %v1037 = vadd.f32 %v1035, %v1036
    %1039 = vrot.lane.b32.xlu0 %v970, 96
    %v1040 = vpop.permute.xlu0 %1039
    %v1041 = vsel %vm140, %v1040, 0
    %1043 = vmatpush.msra.mxu0 0.0
    %1044 = vmatpush.msra.mxu0 0.0
    %1045 = vmatpush.msra.mxu0 0.0
    %1046 = vmatpush.msra.mxu0 0.0
    %1047 = vmatpush.msra.mxu0 0.0
    %1048 = vmatpush.msra.mxu0 0.0
    %1049 = vmatpush.msra.mxu0 0.0
    %1050 = vmatpush.msra.mxu0 0.0
    %1051 = vmatpush.msra.mxu0 0.0
    %1052 = vmatpush.msra.mxu0 0.0
    %1053 = vmatpush.msra.mxu0 0.0
    %1054 = vmatpush.msra.mxu0 0.0
    %1055 = vmatpush.msra.mxu0 %v270
    %1056 = vmatpush.msra.mxu0 %v269
    %1057 = vmatpush.msra.mxu0 %v268
    %1058 = vmatpush.msra.mxu0 %v267
    %1059 = vmatmul.f32.gmra.mxu0 %v1041
    %v1060 = vpop.f32.mrf.mxu0
    %v1061 = vadd.f32 0.0, %v1060
    %1062 = vdwg.mxu0
    %v1063 = vadd.f32 %v972, %v1061
    %v1064 = vxor.u32 %v1063, 2147483648
    %v1065 = vmul.f32 %v1064, 1.442695
    %v1066 = vpow.pop %v1065
    %v1067 = vadd.f32 %v1066, 1.0
    %v1068 = vrcp.pop %v1067
    %v1069 = vmul.f32 %v1067, %v1068
    %v1070 = vsub.f32 1.0, %v1069
    %v1071 = vmul.f32 %v1068, %v1070
    %v1072 = vadd.f32 %v1068, %v1071
    %vm1073 = vweird.f32 %v1067
    %vm1074 = vweird.f32 %v1068
    %vm1075 = vmor %vm1073, %vm1074
    %v1076 = vsel %vm1075, %v1068, %v1072
    %v1077 = vand.u32 2147483647, %v1067
    %vm1078 = vcmp.eq.f32.partialorder %v1077, 8.507059e+37
    %v1079 = vand.u32 %v1067, 2147483648
    %v1080 = vor.u32 1.1754944e-38, %v1079
    %v1081 = vsel %vm1078, %v1080, %v1076
    %v1082 = vmul.f32 1.0, %v1081
    %v1083 = vadd.f32 %v1061, %v392
    %1085 = vrot.lane.b32.xlu0 %v1083, 64
    %v1086 = vpop.permute.xlu0 %1085
    %v1088 = vmul.f32 %v1082, %v1086
    %1090 = vrot.lane.b32.xlu0 %v1088, 64
    %v1091 = vpop.permute.xlu0 %1090
    %v1093 = vadd.f32 %v972, %v1091
    %v1094 = vtanh.pop %v1093
    %v1095 = vsub.f32 1.0, %v1082
    %1097 = vrot.lane.b32.xlu0 %v1094, 96
    %v1098 = vpop.permute.xlu0 %1097
    %v1100 = vmul.f32 %v1095, %v1098
    %v1101 = vmul.f32 %v1082, %v970
    %v1102 = vadd.f32 %v1100, %v1101
    %v1103 = vld [vmem:[%s937] sm:$0xff]
    %v1104 = vld [vmem:[%s935] sm:$0xff]
    %1106 = vrot.lane.b32.xlu0 %v1103, 32
    %v1107 = vpop.permute.xlu0 %1106
    %v1109 = vmul.f32 %v1037, %v1107
    %1111 = vrot.lane.b32.xlu0 %v1104, 32
    %v1112 = vpop.permute.xlu0 %1111
    %v1114 = vmul.f32 %v1102, %v1112
    %1116 = vrot.lane.b32.xlu0 %v1109, 96
    %v1117 = vpop.permute.xlu0 %1116
    %1119 = vst.msk [vmem:[%s955] sm:$0xff] %vm140, %v1117
    %1120 = vst.msk [vmem:[%s953] sm:$0xff] %vm433, %v1114
    %v1121 = vsub.f32 1.0, %v1103
    %1123 = vrot.lane.b32.xlu0 %v1121, 32
    %v1124 = vpop.permute.xlu0 %1123
    %v1126 = vmul.f32 %v963, %v1124
    %v1127 = vadd.f32 %v1109, %v1126
    %v1128 = vsub.f32 1.0, %v1104
    %1130 = vrot.lane.b32.xlu0 %v1128, 32
    %v1131 = vpop.permute.xlu0 %1130
    %v1133 = vmul.f32 %v970, %v1131
    %v1134 = vadd.f32 %v1114, %v1133
    %v1135 = vld [vmem:[%s629] sm:$0xff]
    %v1136 = vld [vmem:[%s625 + $0x8] sm:$0xff]
    %1138 = vrot.lane.b32.xlu0 %v1127, 96
    %v1139 = vpop.permute.xlu0 %1138
    %v1140 = vsel %vm140, %v1139, 0
    %1142 = vmatpush.msra.mxu0 0.0
    %1143 = vmatpush.msra.mxu0 0.0
    %1144 = vmatpush.msra.mxu0 0.0
    %1145 = vmatpush.msra.mxu0 0.0
    %1146 = vmatpush.msra.mxu0 0.0
    %1147 = vmatpush.msra.mxu0 0.0
    %1148 = vmatpush.msra.mxu0 0.0
    %1149 = vmatpush.msra.mxu0 0.0
    %1150 = vmatpush.msra.mxu0 0.0
    %1151 = vmatpush.msra.mxu0 0.0
    %1152 = vmatpush.msra.mxu0 0.0
    %1153 = vmatpush.msra.mxu0 0.0
    %1154 = vmatpush.msra.mxu0 %v266
    %1155 = vmatpush.msra.mxu0 %v265
    %1156 = vmatpush.msra.mxu0 %v264
    %1157 = vmatpush.msra.mxu0 %v263
    %1158 = vmatmul.f32.gmra.mxu0 %v1140
    %v1159 = vpop.f32.mrf.mxu0
    %v1160 = vadd.f32 0.0, %v1159
    %1161 = vdwg.mxu0
    %v1162 = vadd.f32 %v1135, %v1160
    %v1163 = vxor.u32 %v1162, 2147483648
    %v1164 = vmul.f32 %v1163, 1.442695
    %v1165 = vpow.pop %v1164
    %v1166 = vadd.f32 %v1165, 1.0
    %v1167 = vrcp.pop %v1166
    %v1168 = vmul.f32 %v1166, %v1167
    %v1169 = vsub.f32 1.0, %v1168
    %v1170 = vmul.f32 %v1167, %v1169
    %v1171 = vadd.f32 %v1167, %v1170
    %vm1172 = vweird.f32 %v1166
    %vm1173 = vweird.f32 %v1167
    %vm1174 = vmor %vm1172, %vm1173
    %v1175 = vsel %vm1174, %v1167, %v1171
    %v1176 = vand.u32 2147483647, %v1166
    %vm1177 = vcmp.eq.f32.partialorder %v1176, 8.507059e+37
    %v1178 = vand.u32 %v1166, 2147483648
    %v1179 = vor.u32 1.1754944e-38, %v1178
    %v1180 = vsel %vm1177, %v1179, %v1175
    %v1181 = vmul.f32 1.0, %v1180
    %v1182 = vadd.f32 %v1160, %v329
    %1184 = vrot.lane.b32.xlu0 %v1182, 64
    %v1185 = vpop.permute.xlu0 %1184
    %v1187 = vmul.f32 %v1181, %v1185
    %1189 = vrot.lane.b32.xlu0 %v1187, 64
    %v1190 = vpop.permute.xlu0 %1189
    %v1192 = vadd.f32 %v1135, %v1190
    %v1193 = vtanh.pop %v1192
    %v1194 = vsub.f32 1.0, %v1181
    %1196 = vrot.lane.b32.xlu0 %v1193, 96
    %v1197 = vpop.permute.xlu0 %1196
    %v1199 = vmul.f32 %v1194, %v1197
    %v1200 = vmul.f32 %v1181, %v1127
    %v1201 = vadd.f32 %v1199, %v1200
    %1203 = vrot.lane.b32.xlu0 %v1134, 96
    %v1204 = vpop.permute.xlu0 %1203
    %v1205 = vsel %vm140, %v1204, 0
    %1207 = vmatpush.msra.mxu0 0.0
    %1208 = vmatpush.msra.mxu0 0.0
    %1209 = vmatpush.msra.mxu0 0.0
    %1210 = vmatpush.msra.mxu0 0.0
    %1211 = vmatpush.msra.mxu0 0.0
    %1212 = vmatpush.msra.mxu0 0.0
    %1213 = vmatpush.msra.mxu0 0.0
    %1214 = vmatpush.msra.mxu0 0.0
    %1215 = vmatpush.msra.mxu0 0.0
    %1216 = vmatpush.msra.mxu0 0.0
    %1217 = vmatpush.msra.mxu0 0.0
    %1218 = vmatpush.msra.mxu0 0.0
    %1219 = vmatpush.msra.mxu0 %v270
    %1220 = vmatpush.msra.mxu0 %v269
    %1221 = vmatpush.msra.mxu0 %v268
    %1222 = vmatpush.msra.mxu0 %v267
    %1223 = vmatmul.f32.gmra.mxu0 %v1205
    %v1224 = vpop.f32.mrf.mxu0
    %v1225 = vadd.f32 0.0, %v1224
    %1226 = vdwg.mxu0
    %v1227 = vadd.f32 %v1136, %v1225
    %v1228 = vxor.u32 %v1227, 2147483648
    %v1229 = vmul.f32 %v1228, 1.442695
    %v1230 = vpow.pop %v1229
    %v1231 = vadd.f32 %v1230, 1.0
    %v1232 = vrcp.pop %v1231
    %v1233 = vmul.f32 %v1231, %v1232
    %v1234 = vsub.f32 1.0, %v1233
    %v1235 = vmul.f32 %v1232, %v1234
    %v1236 = vadd.f32 %v1232, %v1235
    %vm1237 = vweird.f32 %v1231
    %vm1238 = vweird.f32 %v1232
    %vm1239 = vmor %vm1237, %vm1238
    %v1240 = vsel %vm1239, %v1232, %v1236
    %v1241 = vand.u32 2147483647, %v1231
    %vm1242 = vcmp.eq.f32.partialorder %v1241, 8.507059e+37
    %v1243 = vand.u32 %v1231, 2147483648
    %v1244 = vor.u32 1.1754944e-38, %v1243
    %v1245 = vsel %vm1242, %v1244, %v1240
    %v1246 = vmul.f32 1.0, %v1245
    %v1247 = vadd.f32 %v1225, %v392
    %1249 = vrot.lane.b32.xlu0 %v1247, 64
    %v1250 = vpop.permute.xlu0 %1249
    %v1252 = vmul.f32 %v1246, %v1250
    %1254 = vrot.lane.b32.xlu0 %v1252, 64
    %v1255 = vpop.permute.xlu0 %1254
    %v1257 = vadd.f32 %v1136, %v1255
    %v1258 = vtanh.pop %v1257
    %v1259 = vsub.f32 1.0, %v1246
    %1261 = vrot.lane.b32.xlu0 %v1258, 96
    %v1262 = vpop.permute.xlu0 %1261
    %v1264 = vmul.f32 %v1259, %v1262
    %v1265 = vmul.f32 %v1246, %v1134
    %v1266 = vadd.f32 %v1264, %v1265
    %v1267 = vld [vmem:[%s763] sm:$0xff]
    %v1268 = vld [vmem:[%s761] sm:$0xff]
    %1270 = vrot.lane.b32.xlu0 %v1267, 32
    %v1271 = vpop.permute.xlu0 %1270
    %v1273 = vmul.f32 %v1201, %v1271
    %1275 = vrot.lane.b32.xlu0 %v1268, 32
    %v1276 = vpop.permute.xlu0 %1275
    %v1278 = vmul.f32 %v1266, %v1276
    %1280 = vrot.lane.b32.xlu0 %v1273, 96
    %v1281 = vpop.permute.xlu0 %1280
    %1283 = vst.msk [vmem:[%s781] sm:$0xff] %vm140, %v1281
    %1284 = vst.msk [vmem:[%s779] sm:$0xff] %vm433, %v1278
    %v1285 = vsub.f32 1.0, %v1267
    %1287 = vrot.lane.b32.xlu0 %v1285, 32
    %v1288 = vpop.permute.xlu0 %1287
    %v1290 = vmul.f32 %v1127, %v1288
    %v1291 = vadd.f32 %v1273, %v1290
    %v1292 = vsub.f32 1.0, %v1268
    %1294 = vrot.lane.b32.xlu0 %v1292, 32
    %v1295 = vpop.permute.xlu0 %1294
    %v1297 = vmul.f32 %v1134, %v1295
    %v1298 = vadd.f32 %v1278, %v1297
    %v1299 = vld [vmem:[%s455] sm:$0xff]
    %v1300 = vld [vmem:[%s451 + $0x8] sm:$0xff]
    %1302 = vrot.lane.b32.xlu0 %v1291, 96
    %v1303 = vpop.permute.xlu0 %1302
    %v1304 = vsel %vm140, %v1303, 0
    %1306 = vmatpush.msra.mxu0 0.0
    %1307 = vmatpush.msra.mxu0 0.0
    %1308 = vmatpush.msra.mxu0 0.0
    %1309 = vmatpush.msra.mxu0 0.0
    %1310 = vmatpush.msra.mxu0 0.0
    %1311 = vmatpush.msra.mxu0 0.0
    %1312 = vmatpush.msra.mxu0 0.0
    %1313 = vmatpush.msra.mxu0 0.0
    %1314 = vmatpush.msra.mxu0 0.0
    %1315 = vmatpush.msra.mxu0 0.0
    %1316 = vmatpush.msra.mxu0 0.0
    %1317 = vmatpush.msra.mxu0 0.0
    %1318 = vmatpush.msra.mxu0 %v266
    %1319 = vmatpush.msra.mxu0 %v265
    %1320 = vmatpush.msra.mxu0 %v264
    %1321 = vmatpush.msra.mxu0 %v263
    %1322 = vmatmul.f32.gmra.mxu0 %v1304
    %v1323 = vpop.f32.mrf.mxu0
    %v1324 = vadd.f32 0.0, %v1323
    %1325 = vdwg.mxu0
    %v1326 = vadd.f32 %v1299, %v1324
    %v1327 = vxor.u32 %v1326, 2147483648
    %v1328 = vmul.f32 %v1327, 1.442695
    %v1329 = vpow.pop %v1328
    %v1330 = vadd.f32 %v1329, 1.0
    %v1331 = vrcp.pop %v1330
    %v1332 = vmul.f32 %v1330, %v1331
    %v1333 = vsub.f32 1.0, %v1332
    %v1334 = vmul.f32 %v1331, %v1333
    %v1335 = vadd.f32 %v1331, %v1334
    %vm1336 = vweird.f32 %v1330
    %vm1337 = vweird.f32 %v1331
    %vm1338 = vmor %vm1336, %vm1337
    %v1339 = vsel %vm1338, %v1331, %v1335
    %v1340 = vand.u32 2147483647, %v1330
    %vm1341 = vcmp.eq.f32.partialorder %v1340, 8.507059e+37
    %v1342 = vand.u32 %v1330, 2147483648
    %v1343 = vor.u32 1.1754944e-38, %v1342
    %v1344 = vsel %vm1341, %v1343, %v1339
    %v1345 = vmul.f32 1.0, %v1344
    %v1346 = vadd.f32 %v1324, %v329
    %1348 = vrot.lane.b32.xlu0 %v1346, 64
    %v1349 = vpop.permute.xlu0 %1348
    %v1351 = vmul.f32 %v1345, %v1349
    %1353 = vrot.lane.b32.xlu0 %v1351, 64
    %v1354 = vpop.permute.xlu0 %1353
    %v1356 = vadd.f32 %v1299, %v1354
    %v1357 = vtanh.pop %v1356
    %v1358 = vsub.f32 1.0, %v1345
    %1360 = vrot.lane.b32.xlu0 %v1357, 96
    %v1361 = vpop.permute.xlu0 %1360
    %v1363 = vmul.f32 %v1358, %v1361
    %v1364 = vmul.f32 %v1345, %v1291
    %v1365 = vadd.f32 %v1363, %v1364
    %1367 = vrot.lane.b32.xlu0 %v1298, 96
    %v1368 = vpop.permute.xlu0 %1367
    %v1369 = vsel %vm140, %v1368, 0
    %1371 = vmatpush.msra.mxu0 0.0
    %1372 = vmatpush.msra.mxu0 0.0
    %1373 = vmatpush.msra.mxu0 0.0
    %1374 = vmatpush.msra.mxu0 0.0
    %1375 = vmatpush.msra.mxu0 0.0
    %1376 = vmatpush.msra.mxu0 0.0
    %1377 = vmatpush.msra.mxu0 0.0
    %1378 = vmatpush.msra.mxu0 0.0
    %1379 = vmatpush.msra.mxu0 0.0
    %1380 = vmatpush.msra.mxu0 0.0
    %1381 = vmatpush.msra.mxu0 0.0
    %1382 = vmatpush.msra.mxu0 0.0
    %1383 = vmatpush.msra.mxu0 %v270
    %1384 = vmatpush.msra.mxu0 %v269
    %1385 = vmatpush.msra.mxu0 %v268
    %1386 = vmatpush.msra.mxu0 %v267
    %1387 = vmatmul.f32.gmra.mxu0 %v1369
    %v1388 = vpop.f32.mrf.mxu0
    %v1389 = vadd.f32 0.0, %v1388
    %1390 = vdwg.mxu0
    %v1391 = vadd.f32 %v1300, %v1389
    %v1392 = vxor.u32 %v1391, 2147483648
    %v1393 = vmul.f32 %v1392, 1.442695
    %v1394 = vpow.pop %v1393
    %v1395 = vadd.f32 %v1394, 1.0
    %v1396 = vrcp.pop %v1395
    %v1397 = vmul.f32 %v1395, %v1396
    %v1398 = vsub.f32 1.0, %v1397
    %v1399 = vmul.f32 %v1396, %v1398
    %v1400 = vadd.f32 %v1396, %v1399
    %vm1401 = vweird.f32 %v1395
    %vm1402 = vweird.f32 %v1396
    %vm1403 = vmor %vm1401, %vm1402
    %v1404 = vsel %vm1403, %v1396, %v1400
    %v1405 = vand.u32 2147483647, %v1395
    %vm1406 = vcmp.eq.f32.partialorder %v1405, 8.507059e+37
    %v1407 = vand.u32 %v1395, 2147483648
    %v1408 = vor.u32 1.1754944e-38, %v1407
    %v1409 = vsel %vm1406, %v1408, %v1404
    %v1410 = vmul.f32 1.0, %v1409
    %v1411 = vadd.f32 %v1389, %v392
    %1413 = vrot.lane.b32.xlu0 %v1411, 64
    %v1414 = vpop.permute.xlu0 %1413
    %v1416 = vmul.f32 %v1410, %v1414
    %1418 = vrot.lane.b32.xlu0 %v1416, 64
    %v1419 = vpop.permute.xlu0 %1418
    %v1421 = vadd.f32 %v1300, %v1419
    %v1422 = vtanh.pop %v1421
    %v1423 = vsub.f32 1.0, %v1410
    %1425 = vrot.lane.b32.xlu0 %v1422, 96
    %v1426 = vpop.permute.xlu0 %1425
    %v1428 = vmul.f32 %v1423, %v1426
    %v1429 = vmul.f32 %v1410, %v1298
    %v1430 = vadd.f32 %v1428, %v1429
    %v1431 = vld [vmem:[%s589] sm:$0xff]
    %v1432 = vld [vmem:[%s587] sm:$0xff]
    %1434 = vrot.lane.b32.xlu0 %v1431, 32
    %v1435 = vpop.permute.xlu0 %1434
    %v1437 = vmul.f32 %v1365, %v1435
    %1439 = vrot.lane.b32.xlu0 %v1432, 32
    %v1440 = vpop.permute.xlu0 %1439
    %v1442 = vmul.f32 %v1430, %v1440
    %1444 = vrot.lane.b32.xlu0 %v1437, 96
    %v1445 = vpop.permute.xlu0 %1444
    %1447 = vst.msk [vmem:[%s607] sm:$0xff] %vm140, %v1445
    %1448 = vst.msk [vmem:[%s605] sm:$0xff] %vm433, %v1442
    %v1449 = vsub.f32 1.0, %v1431
    %1451 = vrot.lane.b32.xlu0 %v1449, 32
    %v1452 = vpop.permute.xlu0 %1451
    %v1454 = vmul.f32 %v1291, %v1452
    %v1455 = vadd.f32 %v1437, %v1454
    %v1456 = vsub.f32 1.0, %v1432
    %1458 = vrot.lane.b32.xlu0 %v1456, 32
    %v1459 = vpop.permute.xlu0 %1458
    %v1461 = vmul.f32 %v1298, %v1459
    %v1462 = vadd.f32 %v1442, %v1461
    %v1463 = vld [vmem:[%s283] sm:$0xff]
    %v1464 = vld [vmem:[%s279 + $0x8] sm:$0xff]
    %1466 = vrot.lane.b32.xlu0 %v1455, 96
    %v1467 = vpop.permute.xlu0 %1466
    %v1468 = vsel %vm140, %v1467, 0
    %1470 = vmatpush.msra.mxu0 0.0
    %1471 = vmatpush.msra.mxu0 0.0
    %1472 = vmatpush.msra.mxu0 0.0
    %1473 = vmatpush.msra.mxu0 0.0
    %1474 = vmatpush.msra.mxu0 0.0
    %1475 = vmatpush.msra.mxu0 0.0
    %1476 = vmatpush.msra.mxu0 0.0
    %1477 = vmatpush.msra.mxu0 0.0
    %1478 = vmatpush.msra.mxu0 0.0
    %1479 = vmatpush.msra.mxu0 0.0
    %1480 = vmatpush.msra.mxu0 0.0
    %1481 = vmatpush.msra.mxu0 0.0
    %1482 = vmatpush.msra.mxu0 %v266
    %1483 = vmatpush.msra.mxu0 %v265
    %1484 = vmatpush.msra.mxu0 %v264
    %1485 = vmatpush.msra.mxu0 %v263
    %1486 = vmatmul.f32.gmra.mxu0 %v1468
    %v1487 = vpop.f32.mrf.mxu0
    %v1488 = vadd.f32 0.0, %v1487
    %1489 = vdwg.mxu0
    %v1490 = vadd.f32 %v1463, %v1488
    %v1491 = vxor.u32 %v1490, 2147483648
    %v1492 = vmul.f32 %v1491, 1.442695
    %v1493 = vpow.pop %v1492
    %v1494 = vadd.f32 %v1493, 1.0
    %v1495 = vrcp.pop %v1494
    %v1496 = vmul.f32 %v1494, %v1495
    %v1497 = vsub.f32 1.0, %v1496
    %v1498 = vmul.f32 %v1495, %v1497
    %v1499 = vadd.f32 %v1495, %v1498
    %vm1500 = vweird.f32 %v1494
    %vm1501 = vweird.f32 %v1495
    %vm1502 = vmor %vm1500, %vm1501
    %v1503 = vsel %vm1502, %v1495, %v1499
    %v1504 = vand.u32 2147483647, %v1494
    %vm1505 = vcmp.eq.f32.partialorder %v1504, 8.507059e+37
    %v1506 = vand.u32 %v1494, 2147483648
    %v1507 = vor.u32 1.1754944e-38, %v1506
    %v1508 = vsel %vm1505, %v1507, %v1503
    %v1509 = vmul.f32 1.0, %v1508
    %v1510 = vadd.f32 %v1488, %v329
    %1512 = vrot.lane.b32.xlu0 %v1510, 64
    %v1513 = vpop.permute.xlu0 %1512
    %v1515 = vmul.f32 %v1509, %v1513
    %1517 = vrot.lane.b32.xlu0 %v1515, 64
    %v1518 = vpop.permute.xlu0 %1517
    %v1520 = vadd.f32 %v1463, %v1518
    %v1521 = vtanh.pop %v1520
    %v1522 = vsub.f32 1.0, %v1509
    %1524 = vrot.lane.b32.xlu0 %v1521, 96
    %v1525 = vpop.permute.xlu0 %1524
    %v1527 = vmul.f32 %v1522, %v1525
    %v1528 = vmul.f32 %v1509, %v1455
    %v1529 = vadd.f32 %v1527, %v1528
    %1531 = vrot.lane.b32.xlu0 %v1462, 96
    %v1532 = vpop.permute.xlu0 %1531
    %v1533 = vsel %vm140, %v1532, 0
    %1535 = vmatpush.msra.mxu0 0.0
    %1536 = vmatpush.msra.mxu0 0.0
    %1537 = vmatpush.msra.mxu0 0.0
    %1538 = vmatpush.msra.mxu0 0.0
    %1539 = vmatpush.msra.mxu0 0.0
    %1540 = vmatpush.msra.mxu0 0.0
    %1541 = vmatpush.msra.mxu0 0.0
    %1542 = vmatpush.msra.mxu0 0.0
    %1543 = vmatpush.msra.mxu0 0.0
    %1544 = vmatpush.msra.mxu0 0.0
    %1545 = vmatpush.msra.mxu0 0.0
    %1546 = vmatpush.msra.mxu0 0.0
    %1547 = vmatpush.msra.mxu0 %v270
    %1548 = vmatpush.msra.mxu0 %v269
    %1549 = vmatpush.msra.mxu0 %v268
    %1550 = vmatpush.msra.mxu0 %v267
    %1551 = vmatmul.f32.gmra.mxu0 %v1533
    %v1552 = vpop.f32.mrf.mxu0
    %v1553 = vadd.f32 0.0, %v1552
    %1554 = vdwg.mxu0
    %v1555 = vadd.f32 %v1464, %v1553
    %v1556 = vxor.u32 %v1555, 2147483648
    %v1557 = vmul.f32 %v1556, 1.442695
    %v1558 = vpow.pop %v1557
    %v1559 = vadd.f32 %v1558, 1.0
    %v1560 = vrcp.pop %v1559
    %v1561 = vmul.f32 %v1559, %v1560
    %v1562 = vsub.f32 1.0, %v1561
    %v1563 = vmul.f32 %v1560, %v1562
    %v1564 = vadd.f32 %v1560, %v1563
    %vm1565 = vweird.f32 %v1559
    %vm1566 = vweird.f32 %v1560
    %vm1567 = vmor %vm1565, %vm1566
    %v1568 = vsel %vm1567, %v1560, %v1564
    %v1569 = vand.u32 2147483647, %v1559
    %vm1570 = vcmp.eq.f32.partialorder %v1569, 8.507059e+37
    %v1571 = vand.u32 %v1559, 2147483648
    %v1572 = vor.u32 1.1754944e-38, %v1571
    %v1573 = vsel %vm1570, %v1572, %v1568
    %v1574 = vmul.f32 1.0, %v1573
    %v1575 = vadd.f32 %v1553, %v392
    %1577 = vrot.lane.b32.xlu0 %v1575, 64
    %v1578 = vpop.permute.xlu0 %1577
    %v1580 = vmul.f32 %v1574, %v1578
    %1582 = vrot.lane.b32.xlu0 %v1580, 64
    %v1583 = vpop.permute.xlu0 %1582
    %v1585 = vadd.f32 %v1464, %v1583
    %v1586 = vtanh.pop %v1585
    %v1587 = vsub.f32 1.0, %v1574
    %1589 = vrot.lane.b32.xlu0 %v1586, 96
    %v1590 = vpop.permute.xlu0 %1589
    %v1592 = vmul.f32 %v1587, %v1590
    %v1593 = vmul.f32 %v1574, %v1462
    %v1594 = vadd.f32 %v1592, %v1593
    %v1595 = vld [vmem:[%s415] sm:$0xff]
    %v1596 = vld [vmem:[%s1] sm:$0xff]
    %1598 = vrot.lane.b32.xlu0 %v1595, 32
    %v1599 = vpop.permute.xlu0 %1598
    %v1601 = vmul.f32 %v1529, %v1599
    %1603 = vrot.lane.b32.xlu0 %v1596, 32
    %v1604 = vpop.permute.xlu0 %1603
    %v1606 = vmul.f32 %v1594, %v1604
    %1608 = vrot.lane.b32.xlu0 %v1601, 96
    %v1609 = vpop.permute.xlu0 %1608
    %1611 = vst.msk [vmem:[%s432] sm:$0xff] %vm140, %v1609
    %1612 = vst.msk [vmem:[#allocation12] sm:$0xff] %vm433, %v1606
    %v1613 = vsub.f32 1.0, %v1595
    %1615 = vrot.lane.b32.xlu0 %v1613, 32
    %v1616 = vpop.permute.xlu0 %1615
    %v1618 = vmul.f32 %v1455, %v1616
    %v1619 = vadd.f32 %v1601, %v1618
    %v1620 = vsub.f32 1.0, %v1596
    %1622 = vrot.lane.b32.xlu0 %v1620, 32
    %v1623 = vpop.permute.xlu0 %1622
    %v1625 = vmul.f32 %v1462, %v1623
    %v1626 = vadd.f32 %v1606, %v1625
    %v1627 = vld [vmem:[#allocation9] sm:$0xff]
    %v1628 = vld [vmem:[#allocation9 + $0x8] sm:$0xff]
    %v1629 = vld [vmem:[#allocation9 + $0x10] sm:$0xff]
    %v1630 = vld [vmem:[#allocation9 + $0x18] sm:$0xff]
    %v1631 = vld [vmem:[#allocation11] sm:$0xff]
    %v1632 = vld [vmem:[#allocation11 + $0x8] sm:$0xff]
    %v1633 = vld [vmem:[#allocation11 + $0x10] sm:$0xff]
    %v1634 = vld [vmem:[#allocation11 + $0x18] sm:$0xff]
    %1636 = vrot.lane.b32.xlu0 %v1626, 96
    %v1637 = vpop.permute.xlu0 %1636
    %v1638 = vsel %vm140, %v1637, 0
    %1640 = vmatpush.msra.mxu0 0.0
    %1641 = vmatpush.msra.mxu0 0.0
    %1642 = vmatpush.msra.mxu0 0.0
    %1643 = vmatpush.msra.mxu0 0.0
    %1644 = vmatpush.msra.mxu0 0.0
    %1645 = vmatpush.msra.mxu0 0.0
    %1646 = vmatpush.msra.mxu0 0.0
    %1647 = vmatpush.msra.mxu0 0.0
    %1648 = vmatpush.msra.mxu0 0.0
    %1649 = vmatpush.msra.mxu0 0.0
    %1650 = vmatpush.msra.mxu0 0.0
    %1651 = vmatpush.msra.mxu0 0.0
    %1652 = vmatpush.msra.mxu0 %v1634
    %1653 = vmatpush.msra.mxu0 %v1633
    %1654 = vmatpush.msra.mxu0 %v1632
    %1655 = vmatpush.msra.mxu0 %v1631
    %1656 = vmatmul.f32.gmra.mxu0 %v1638
    %v1657 = vpop.f32.mrf.mxu0
    %v1658 = vadd.f32 0.0, %v1657
    %1659 = vdwg.mxu0
    %1661 = vrot.lane.b32.xlu0 %v1619, 96
    %v1662 = vpop.permute.xlu0 %1661
    %v1663 = vsel %vm140, %v1662, 0
    %1665 = vmatpush.msra.mxu0 0.0
    %1666 = vmatpush.msra.mxu0 0.0
    %1667 = vmatpush.msra.mxu0 0.0
    %1668 = vmatpush.msra.mxu0 0.0
    %1669 = vmatpush.msra.mxu0 0.0
    %1670 = vmatpush.msra.mxu0 0.0
    %1671 = vmatpush.msra.mxu0 0.0
    %1672 = vmatpush.msra.mxu0 0.0
    %1673 = vmatpush.msra.mxu0 0.0
    %1674 = vmatpush.msra.mxu0 0.0
    %1675 = vmatpush.msra.mxu0 0.0
    %1676 = vmatpush.msra.mxu0 0.0
    %1677 = vmatpush.msra.mxu0 %v1630
    %1678 = vmatpush.msra.mxu0 %v1629
    %1679 = vmatpush.msra.mxu0 %v1628
    %1680 = vmatpush.msra.mxu0 %v1627
    %1681 = vmatmul.f32.gmra.mxu0 %v1663
    %v1682 = vpop.f32.mrf.mxu0
    %v1683 = vadd.f32 %v1658, %v1682
    %1684 = vdwg.mxu0
    %v1685 = vld [vmem:[%s10] sm:$0x1]
    %v1687 = vperm.slane %v1685, 0
    %v1689 = vadd.f32 %v1683, %v1687
    %v1690 = vtanh.pop %v1689
    %1691 = vst.msk [vmem:[#allocation13] sm:$0xff] %vm140, %v1690
    // Predicated region
    $region66: #{tpu_custom_call.1} parent=1 // pred_check
      _
    $region67: #{tpu_custom_call.1} parent=1 // pred_check_branch
      %1693 = sbr.rel (0) target = $region69
    $region68: #{tpu_custom_call.1} parent=1 // pred_region
      %1695 = vsyncadd [#allocation5], 0
      %s1696 = sshll.u32 [#allocation12], 4
      %s1697 = int_to_ptr.vmem [resolvable:$true] %s1696
      %s1698 = sshll.u32 %s11, 4
      %s1699 = int_to_ptr.hbm [resolvable:$true] %s1698
      %1704 = dma.vmem_to_hbm [thread:$0]  %s1697, 1024, %s1699, [#allocation5], 128, 128, 8
    $region69: #{tpu_custom_call.1} parent=1 // pred_fallthru
      _
    // Predicated region
    $region70: #{tpu_custom_call.1} parent=1 // pred_check
      _
    $region71: #{tpu_custom_call.1} parent=1 // pred_check_branch
      %1706 = sbr.rel (0) target = $region73
    $region72: #{tpu_custom_call.1} parent=1 // pred_region
      %1708 = vsyncadd [#allocation14], 0
      %s1710 = sshll.u32 [#allocation13], 4
      %s1711 = int_to_ptr.vmem [resolvable:$true] %s1710
      %s1712 = sshll.u32 %s12, 4
      %s1713 = int_to_ptr.hbm [resolvable:$true] %s1712
      %1715 = dma.vmem_to_hbm [thread:$0]  %s1711, 128, %s1713, [#allocation14]
    $region73: #{tpu_custom_call.1} parent=1 // pred_fallthru
      _
    // Predicated region
    $region74: #{tpu_custom_call.1} parent=1 // pred_check
      _
    $region75: #{tpu_custom_call.1} parent=1 // pred_check_branch
      %1717 = sbr.rel (0) target = $region77
    $region76: #{tpu_custom_call.1} parent=1 // pred_region
      %1719 = dma.done [#allocation5], 1024
    $region77: #{tpu_custom_call.1} parent=1 // pred_fallthru
      _
    // Predicated region
    $region78: #{tpu_custom_call.1} parent=1 // pred_check
      _
    $region79: #{tpu_custom_call.1} parent=1 // pred_check_branch
      %1721 = sbr.rel (0) target = $region81
    $region80: #{tpu_custom_call.1} parent=1 // pred_region
      %1723 = dma.done [#allocation14], 128
    $region81: #{tpu_custom_call.1} parent=1 // pred_fallthru
      _
    %1724 = vsyncpa [#allocation4], 1
    %1725 = vsyncpa [#allocation7], 1
    %1726 = vsyncpa [#allocation10], 1
    %1727 = vsyncpa [#allocation5], 1
    %1728 = vsyncpa [#allocation14], 1

</llo_original>
